<compile_context>
chip_gen: v6e
topology: v6e:2x2x1
jax: 0.10.0
libtpu: 0.0.40
codegen_flags: <defaults>
</compile_context>

<pallas_src>
import functools

import jax
import jax.numpy as jnp
from jax.experimental import pallas as pl
from jax.experimental.pallas import tpu as pltpu


# ------------------------------ small helpers ------------------------------ #

def _cdiv(a, b):
    return (a + b - 1) // b


def _round_up(a, m):
    return _cdiv(a, m) * m


def _vmem_capacity_bytes():
    try:
        info = pltpu.get_tpu_info()
        for name in ("vmem_capacity_bytes", "vmem_bytes", "vmem_size_bytes"):
            v = getattr(info, name, None)
            if v:
                return int(v)
    except Exception:
        pass
    return 128 << 20  # v5e / v6e default


def _vmem_limit_bytes():
    # <= ~48 MiB on v7x (64 MiB physical); <= 96 MiB on v5e/v6e (128 MiB).
    return int(min(96 << 20, (_vmem_capacity_bytes() * 3) // 4))


def _pick_lane_tile(total, cap):
    """Tile for a lane (last) dim: a multiple of 128 dividing `total`, or the
    full dim.  Only pads (rare fallback) when neither is possible."""
    cap = int(max(128, cap))
    if total <= cap:
        return total, total                       # full-dim block, no pad
    t = (cap // 128) * 128
    while t >= 128:
        if total % t == 0:
            return t, total                       # exact divisor, no pad
        t -= 128
    t = (cap // 128) * 128                        # TODO(synk): in-kernel masked tail
    return t, _round_up(total, t)                 # rare fallback: pad lanes up


# ------------------------------ Pallas kernels ------------------------------ #

def _proj_kernel(x_ref, wq_ref, wk_ref, wv_ref, bq_ref, bk_ref, bv_ref,
                 q_ref, k_ref, v_ref):
    """Fused 1x1x1-conv projections in (C, spatial) orientation.

    x_ref  : (C, TN)     lane-dense spatial*batch columns
    w*_ref : (Cout, C)   conv weights
    b*_ref : (Cout, 1)   conv biases (f32)
    outs   : (Cout, TN)  lane-dense
    """
    x = x_ref[...]
    q = jnp.dot(wq_ref[...], x, preferred_element_type=jnp.float32) + bq_ref[...]
    k = jnp.dot(wk_ref[...], x, preferred_element_type=jnp.float32) + bk_ref[...]
    v = jnp.dot(wv_ref[...], x, preferred_element_type=jnp.float32) + bv_ref[...]
    q_ref[...] = q.astype(q_ref.dtype)
    k_ref[...] = k.astype(k_ref.dtype)
    v_ref[...] = v.astype(v_ref.dtype)


def _attn_kernel(scale_inv, approx_recip, q_ref, k_ref, v_ref, o_ref):
    """Groups-in-lanes attention over GT independent (b, l1*l2) groups.

    q_ref : (L3, Cq, GT)   Q_reshaped   (group axis in lanes)
    k_ref : (Cq, L3, GT)   K_reshaped
    v_ref : (L3, C,  GT)   V_reshaped
    o_ref : (L3, C,  GT)   softmax(Q K / scale) @ V
    All broadcasts are sublane/leading-dim only; stores are lane-dense.
    """
    l3, cq, _ = q_ref.shape
    q = q_ref[...].astype(jnp.float32) * scale_inv     # fold 1/scale into Q
    k = k_ref[...].astype(jnp.float32)
    v = v_ref[...].astype(jnp.float32)

    # s[i, j, g] = sum_c q[i, c, g] * k[c, j, g]  -- per-lane VPU FMAs,
    # sequential accumulation keeps live ranges bounded (cq is tiny).
    s = q[:, 0:1, :] * k[0:1, :, :]
    for ch in range(1, cq):
        s = s + q[:, ch:ch + 1, :] * k[ch:ch + 1, :, :]

    m = jnp.max(s, axis=1, keepdims=True)               # (L3, 1, GT)
    p = jnp.exp(s - m)
    denom = jnp.sum(p, axis=1, keepdims=True)
    if approx_recip:
        p = p * pl.reciprocal(denom, approx=True)        # EUP slot, ~1e-3 rel err
    else:
        p = p / denom                                    # exact softmax (default)

    # o[i, c, g] = sum_j p[i, j, g] * v[j, c, g]
    o = p[:, 0:1, :] * v[0:1, :, :]
    for j in range(1, l3):
        o = o + p[:, j:j + 1, :] * v[j:j + 1, :, :]
    o_ref[...] = o.astype(o_ref.dtype)


# --------------------------------- wrappers --------------------------------- #

def _project(x_gl, wq, wk, wv, bq, bk, bv, qkv_dtype):
    """x_gl: (C, N) -> q (Cq, N), k (Cq, N), v (C, N); all lane-dense over N."""
    c, n = x_gl.shape
    cq = wq.shape[0]
    wout = 2 * cq + c

    limit = _vmem_limit_bytes()
    budget = limit // 3
    per_lane = (2 * c * x_gl.dtype.itemsize                         # x block (x2 buf)
                + wout * (4 + 2 * jnp.dtype(qkv_dtype).itemsize))   # f32 acc + out blocks
    cap = min(32768, max(128, budget // max(per_lane, 1)))
    if n >= 256:                                 # keep >= 2 grid steps (v7x megacore)
        cap = min(cap, max(128, (n // 2) // 128 * 128))
    tn, n_pad = _pick_lane_tile(n, cap)
    if n_pad != n:                               # rare fallback only
        x_gl = jnp.pad(x_gl, ((0, 0), (0, n_pad - n)))

    q_n, k_n, v_n = pl.pallas_call(
        _proj_kernel,
        out_shape=(jax.ShapeDtypeStruct((cq, n_pad), qkv_dtype),
                   jax.ShapeDtypeStruct((cq, n_pad), qkv_dtype),
                   jax.ShapeDtypeStruct((c, n_pad), qkv_dtype)),
        grid=(n_pad // tn,),
        in_specs=[pl.BlockSpec((c, tn), lambda i: (0, i)),
                  pl.BlockSpec((cq, c), lambda i: (0, 0)),
                  pl.BlockSpec((cq, c), lambda i: (0, 0)),
                  pl.BlockSpec((c, c), lambda i: (0, 0)),
                  pl.BlockSpec((cq, 1), lambda i: (0, 0)),
                  pl.BlockSpec((cq, 1), lambda i: (0, 0)),
                  pl.BlockSpec((c, 1), lambda i: (0, 0))],
        out_specs=(pl.BlockSpec((cq, tn), lambda i: (0, i)),
                   pl.BlockSpec((cq, tn), lambda i: (0, i)),
                   pl.BlockSpec((c, tn), lambda i: (0, i))),
        compiler_params=pltpu.CompilerParams(
            dimension_semantics=("parallel",),
            vmem_limit_bytes=limit),
    )(x_gl, wq, wk, wv, bq, bk, bv)

    if n_pad != n:
        q_n, k_n, v_n = q_n[:, :n], k_n[:, :n], v_n[:, :n]
    return q_n, k_n, v_n


def _attention(q_gl, k_gl, v_gl, scale_inv, approx_recip):
    """q_gl: (L3, Cq, BG); k_gl: (Cq, L3, BG); v_gl: (L3, C, BG) -> (L3, C, BG) f32."""
    l3, cq, bg = q_gl.shape
    c = v_gl.shape[1]
    in_it = jnp.dtype(q_gl.dtype).itemsize

    limit = _vmem_limit_bytes()
    budget = limit // 3
    per_lane = (2 * (2 * l3 * cq + l3 * c) * in_it   # pipelined input blocks (x2 buf)
                + (2 * l3 * cq + l3 * c) * 4         # f32 upcasts of q, k, v
                + 2 * l3 * l3 * 4                    # s and p
                + 2 * l3 * 4                         # row max / denom
                + 2 * l3 * c * 4                     # o accumulator + live term
                + 2 * l3 * c * 4)                    # f32 output block (x2 buf)
    cap = min(4096, max(128, budget // max(per_lane, 1)))
    if bg >= 256:                                    # keep >= 2 grid steps (v7x megacore)
        cap = min(cap, max(128, (bg // 2) // 128 * 128))
    gt, bg_pad = _pick_lane_tile(bg, cap)
    if bg_pad != bg:                                 # rare fallback only
        pad = ((0, 0), (0, 0), (0, bg_pad - bg))
        q_gl = jnp.pad(q_gl, pad)
        k_gl = jnp.pad(k_gl, pad)
        v_gl = jnp.pad(v_gl, pad)

    out = pl.pallas_call(
        functools.partial(_attn_kernel, scale_inv, approx_recip),
        out_shape=jax.ShapeDtypeStruct((l3, c, bg_pad), jnp.float32),
        grid=(bg_pad // gt,),
        in_specs=[pl.BlockSpec((l3, cq, gt), lambda i: (0, 0, i)),
                  pl.BlockSpec((cq, l3, gt), lambda i: (0, 0, i)),
                  pl.BlockSpec((l3, c, gt), lambda i: (0, 0, i))],
        out_specs=pl.BlockSpec((l3, c, gt), lambda i: (0, 0, i)),
        compiler_params=pltpu.CompilerParams(
            dimension_semantics=("parallel",),
            vmem_limit_bytes=limit),
    )(q_gl, k_gl, v_gl)

    if bg_pad != bg:
        out = out[:, :, :bg]
    return out


def issa_forward(x, params, reduction_ratio=8, matmul_dtype=jnp.float32,
                 qkv_dtype=None, approx_recip=False):
    """Pallas ISSA forward.  x: (B, C, L1, L2, L3) -> (B, L1*L2, L3, C)."""
    B, C, L1, L2, L3 = x.shape
    assert C % reduction_ratio == 0
    cq = C // reduction_ratio
    scale_inv = 1.0 / (float(cq) ** 0.5)
    if qkv_dtype is None:
        qkv_dtype = matmul_dtype
    G = L1 * L2
    BG = B * G
    N = L3 * BG

    # Groups-in-lanes layout for x: (B, C, G, L3) -> (C, L3, B, G) -> (C, N).
    # Only input-side XLA layout pass; Q/K/V never need a separate permute.
    x_gl = jnp.transpose(x.reshape(B, C, G, L3), (1, 3, 0, 2)).reshape(C, N)

    q_n, k_n, v_n = _project(
        x_gl.astype(matmul_dtype),
        params["wq"].astype(matmul_dtype),
        params["wk"].astype(matmul_dtype),
        params["wv"].astype(matmul_dtype),
        params["bq"].astype(jnp.float32).reshape(cq, 1),
        params["bk"].astype(jnp.float32).reshape(cq, 1),
        params["bv"].astype(jnp.float32).reshape(C, 1),
        qkv_dtype)

    # PyTorch's permute(0,2,3,1,4).contiguous().view(...) reinterpretation of
    # each per-group (Cout, L3) block as (L3, Cout) preserves flat order in
    # this layout, so these reshapes are free (no data movement).
    q_gl = q_n.reshape(L3, cq, BG)     # Q_reshaped, groups in lanes
    k_gl = k_n.reshape(cq, L3, BG)     # K_reshaped
    v_gl = v_n.reshape(L3, C, BG)      # V_reshaped

    o_gl = _attention(q_gl, k_gl, v_gl, scale_inv, approx_recip)   # (L3, C, BG)

    # Back to the PyTorch output layout (B, L1*L2, L3, C).
    return jnp.transpose(o_gl.reshape(L3, C, B, G), (2, 3, 0, 1))


# ----------------------------- pure-JAX reference ---------------------------- #

def issa_reference(x, params, reduction_ratio=8,
                   matmul_dtype=jnp.float32, qkv_dtype=None):
    """Mirror of the PyTorch module, optionally matching the kernel's bf16
    matmul inputs / bf16 qkv storage so tolerances stay tight."""
    B, C, L1, L2, L3 = x.shape
    cq = C // reduction_ratio
    if qkv_dtype is None:
        qkv_dtype = matmul_dtype
    xm = x.astype(matmul_dtype)

    def conv1(w, b):
        y = jnp.einsum("bcxyz,oc->boxyz", xm, w.astype(matmul_dtype),
                       preferred_element_type=jnp.float32)
        y = y + b[None, :, None, None, None]
        return y.astype(qkv_dtype).astype(jnp.float32)

    Q = conv1(params["wq"], params["bq"])
    K = conv1(params["wk"], params["bk"])
    V = conv1(params["wv"], params["bv"])
    Qr = jnp.transpose(Q, (0, 2, 3, 1, 4)).reshape(B, L1 * L2, L3, -1)
    Kr = jnp.transpose(K, (0, 2, 3, 1, 4)).reshape(B, L1 * L2, cq, L3)
    Vr = jnp.transpose(V, (0, 2, 3, 1, 4)).reshape(B, L1 * L2, L3, -1)
    scores = jnp.matmul(Qr, Kr) / (float(cq) ** 0.5)
    w = jax.nn.softmax(scores, axis=-1)
    return jnp.matmul(w, Vr)


# ----------------------------------- main ------------------------------------ #

if __name__ == "__main__":
    key = jax.random.PRNGKey(0)
    B, C, L1, L2, L3 = 2, 16, 8, 8, 8      # BG = 128 groups -> one full lane tile
    reduction = 8
    cq = C // reduction

    ks = jax.random.split(key, 7)
    x = jax.random.normal(ks[0], (B, C, L1, L2, L3), jnp.float32)
    # Conv3d(kernel_size=1) weight (Cout, C, 1, 1, 1) stored as (Cout, C); bias (Cout,).
    params = dict(
        wq=0.1 * jax.random.normal(ks[1], (cq, C), jnp.float32),
        wk=0.1 * jax.random.normal(ks[2], (cq, C), jnp.float32),
        wv=0.1 * jax.random.normal(ks[3], (C, C), jnp.float32),
        bq=0.01 * jax.random.normal(ks[4], (cq,), jnp.float32),
        bk=0.01 * jax.random.normal(ks[5], (cq,), jnp.float32),
        bv=0.01 * jax.random.normal(ks[6], (C,), jnp.float32),
    )

    # f32 MXU path, exact softmax.
    fwd_f32 = jax.jit(functools.partial(
        issa_forward, reduction_ratio=reduction, matmul_dtype=jnp.float32))
    out = jax.block_until_ready(fwd_f32(x, params))
    assert out.shape == (B, L1 * L2, L3, C), out.shape
    ref = jax.block_until_ready(issa_reference(x, params, reduction))
    err = float(jnp.max(jnp.abs(out - ref)))
    if err > 2e-3:
        raise AssertionError(f"f32 Pallas/reference mismatch, max abs err = {err}")

    # bf16 matmuls + bf16 qkv storage (v6e/v7x bandwidth mode) + approx recip,
    # checked against a reference with matching cast points.
    fwd_bf16 = jax.jit(functools.partial(
        issa_forward, reduction_ratio=reduction, matmul_dtype=jnp.bfloat16,
        approx_recip=True))
    out_bf = jax.block_until_ready(fwd_bf16(x, params))
    ref_bf = jax.block_until_ready(
        issa_reference(x, params, reduction, matmul_dtype=jnp.bfloat16))
    err_bf = float(jnp.max(jnp.abs(out_bf - ref_bf)))
    if err_bf > 2e-2:
        raise AssertionError(f"bf16 Pallas/reference mismatch, max abs err = {err_bf}")

    print("KERNEL_OK")
</pallas_src>

<mosaic_0001>
module attributes {stable_mosaic.version = 11 : i64} {
  func.func @_proj_kernel(%arg0: i32, %arg1: memref<16x512xf32, #tpu.memory_space<vmem>>, %arg2: memref<2x16xf32, #tpu.memory_space<vmem>>, %arg3: memref<2x16xf32, #tpu.memory_space<vmem>>, %arg4: memref<16x16xf32, #tpu.memory_space<vmem>>, %arg5: memref<2x1xf32, #tpu.memory_space<vmem>>, %arg6: memref<2x1xf32, #tpu.memory_space<vmem>>, %arg7: memref<16x1xf32, #tpu.memory_space<vmem>>, %arg8: memref<2x512xf32, #tpu.memory_space<vmem>>, %arg9: memref<2x512xf32, #tpu.memory_space<vmem>>, %arg10: memref<16x512xf32, #tpu.memory_space<vmem>>) attributes {dimension_semantics = [#tpu.dimension_semantics<parallel>], iteration_bounds = array<i64: 2>, scalar_prefetch = 0 : i64, scratch_operands = 0 : i64, tpu.core_type = #tpu.core_type<tc>, window_params = [{transform_indices = @transform_0, window_bounds = array<i64: 16, 512>}, {pipeline_mode = #tpu.pipeline_mode<synchronous>, transform_indices = @transform_1, window_bounds = array<i64: 2, 16>}, {pipeline_mode = #tpu.pipeline_mode<synchronous>, transform_indices = @transform_2, window_bounds = array<i64: 2, 16>}, {pipeline_mode = #tpu.pipeline_mode<synchronous>, transform_indices = @transform_3, window_bounds = array<i64: 16, 16>}, {pipeline_mode = #tpu.pipeline_mode<synchronous>, transform_indices = @transform_4, window_bounds = array<i64: 2, 1>}, {pipeline_mode = #tpu.pipeline_mode<synchronous>, transform_indices = @transform_5, window_bounds = array<i64: 2, 1>}, {pipeline_mode = #tpu.pipeline_mode<synchronous>, transform_indices = @transform_6, window_bounds = array<i64: 16, 1>}, {transform_indices = @transform_7, window_bounds = array<i64: 2, 512>}, {transform_indices = @transform_8, window_bounds = array<i64: 2, 512>}, {transform_indices = @transform_9, window_bounds = array<i64: 16, 512>}]} {
    %c0 = arith.constant 0 : index
    %c0_0 = arith.constant 0 : index
    %0 = vector.load %arg1[%c0, %c0_0] : memref<16x512xf32, #tpu.memory_space<vmem>>, vector<16x512xf32>
    %c0_1 = arith.constant 0 : index
    %c0_2 = arith.constant 0 : index
    %1 = vector.load %arg2[%c0_1, %c0_2] : memref<2x16xf32, #tpu.memory_space<vmem>>, vector<2x16xf32>
    %cst = arith.constant dense<0.000000e+00> : vector<2x512xf32>
    %2 = tpu.matmul %1, %0, %cst {dimension_numbers = #tpu.dot_dimension_numbers<[1], [0], [0], [1], [0, 0, 1, 1], [], []>} : vector<2x16xf32>, vector<16x512xf32>, vector<2x512xf32> -> vector<2x512xf32>
    %c0_3 = arith.constant 0 : index
    %c0_4 = arith.constant 0 : index
    %3 = vector.load %arg5[%c0_3, %c0_4] : memref<2x1xf32, #tpu.memory_space<vmem>>, vector<2x1xf32>
    %4 = vector.broadcast %3 : vector<2x1xf32> to vector<2x512xf32>
    %5 = arith.addf %2, %4 : vector<2x512xf32>
    %c0_5 = arith.constant 0 : index
    %c0_6 = arith.constant 0 : index
    %6 = vector.load %arg3[%c0_5, %c0_6] : memref<2x16xf32, #tpu.memory_space<vmem>>, vector<2x16xf32>
    %cst_7 = arith.constant dense<0.000000e+00> : vector<2x512xf32>
    %7 = tpu.matmul %6, %0, %cst_7 {dimension_numbers = #tpu.dot_dimension_numbers<[1], [0], [0], [1], [0, 0, 1, 1], [], []>} : vector<2x16xf32>, vector<16x512xf32>, vector<2x512xf32> -> vector<2x512xf32>
    %c0_8 = arith.constant 0 : index
    %c0_9 = arith.constant 0 : index
    %8 = vector.load %arg6[%c0_8, %c0_9] : memref<2x1xf32, #tpu.memory_space<vmem>>, vector<2x1xf32>
    %9 = vector.broadcast %8 : vector<2x1xf32> to vector<2x512xf32>
    %10 = arith.addf %7, %9 : vector<2x512xf32>
    %c0_10 = arith.constant 0 : index
    %c0_11 = arith.constant 0 : index
    %11 = vector.load %arg4[%c0_10, %c0_11] : memref<16x16xf32, #tpu.memory_space<vmem>>, vector<16x16xf32>
    %cst_12 = arith.constant dense<0.000000e+00> : vector<16x512xf32>
    %12 = tpu.matmul %11, %0, %cst_12 {dimension_numbers = #tpu.dot_dimension_numbers<[1], [0], [0], [1], [0, 0, 1, 1], [], []>} : vector<16x16xf32>, vector<16x512xf32>, vector<16x512xf32> -> vector<16x512xf32>
    %c0_13 = arith.constant 0 : index
    %c0_14 = arith.constant 0 : index
    %13 = vector.load %arg7[%c0_13, %c0_14] : memref<16x1xf32, #tpu.memory_space<vmem>>, vector<16x1xf32>
    %14 = vector.broadcast %13 : vector<16x1xf32> to vector<16x512xf32>
    %15 = arith.addf %12, %14 : vector<16x512xf32>
    %c0_15 = arith.constant 0 : index
    %c0_16 = arith.constant 0 : index
    %16 = vector.load %arg8[%c0_15, %c0_16] : memref<2x512xf32, #tpu.memory_space<vmem>>, vector<2x512xf32>
    tpu.vector_store %arg8[%c0_15, %c0_16], %5 {strides = array<i32>} : memref<2x512xf32, #tpu.memory_space<vmem>>, vector<2x512xf32>,
    %c0_17 = arith.constant 0 : index
    %c0_18 = arith.constant 0 : index
    %17 = vector.load %arg9[%c0_17, %c0_18] : memref<2x512xf32, #tpu.memory_space<vmem>>, vector<2x512xf32>
    tpu.vector_store %arg9[%c0_17, %c0_18], %10 {strides = array<i32>} : memref<2x512xf32, #tpu.memory_space<vmem>>, vector<2x512xf32>,
    %c0_19 = arith.constant 0 : index
    %c0_20 = arith.constant 0 : index
    %18 = vector.load %arg10[%c0_19, %c0_20] : memref<16x512xf32, #tpu.memory_space<vmem>>, vector<16x512xf32>
    tpu.vector_store %arg10[%c0_19, %c0_20], %15 {strides = array<i32>} : memref<16x512xf32, #tpu.memory_space<vmem>>, vector<16x512xf32>,
    return
  }
  func.func @transform_0(%arg0: i32) -> (i32, i32) {
    %c0_i32 = arith.constant 0 : i32
    %c0_i32_0 = arith.constant 0 : i32
    return %c0_i32, %arg0 : i32, i32
  }
  func.func @transform_1(%arg0: i32) -> (i32, i32) {
    %c0_i32 = arith.constant 0 : i32
    %c0_i32_0 = arith.constant 0 : i32
    %c0_i32_1 = arith.constant 0 : i32
    return %c0_i32, %c0_i32_0 : i32, i32
  }
  func.func @transform_2(%arg0: i32) -> (i32, i32) {
    %c0_i32 = arith.constant 0 : i32
    %c0_i32_0 = arith.constant 0 : i32
    %c0_i32_1 = arith.constant 0 : i32
    return %c0_i32, %c0_i32_0 : i32, i32
  }
  func.func @transform_3(%arg0: i32) -> (i32, i32) {
    %c0_i32 = arith.constant 0 : i32
    %c0_i32_0 = arith.constant 0 : i32
    %c0_i32_1 = arith.constant 0 : i32
    return %c0_i32, %c0_i32_0 : i32, i32
  }
  func.func @transform_4(%arg0: i32) -> (i32, i32) {
    %c0_i32 = arith.constant 0 : i32
    %c0_i32_0 = arith.constant 0 : i32
    %c0_i32_1 = arith.constant 0 : i32
    return %c0_i32, %c0_i32_0 : i32, i32
  }
  func.func @transform_5(%arg0: i32) -> (i32, i32) {
    %c0_i32 = arith.constant 0 : i32
    %c0_i32_0 = arith.constant 0 : i32
    %c0_i32_1 = arith.constant 0 : i32
    return %c0_i32, %c0_i32_0 : i32, i32
  }
  func.func @transform_6(%arg0: i32) -> (i32, i32) {
    %c0_i32 = arith.constant 0 : i32
    %c0_i32_0 = arith.constant 0 : i32
    %c0_i32_1 = arith.constant 0 : i32
    return %c0_i32, %c0_i32_0 : i32, i32
  }
  func.func @transform_7(%arg0: i32) -> (i32, i32) {
    %c0_i32 = arith.constant 0 : i32
    %c0_i32_0 = arith.constant 0 : i32
    return %c0_i32, %arg0 : i32, i32
  }
  func.func @transform_8(%arg0: i32) -> (i32, i32) {
    %c0_i32 = arith.constant 0 : i32
    %c0_i32_0 = arith.constant 0 : i32
    return %c0_i32, %arg0 : i32, i32
  }
  func.func @transform_9(%arg0: i32) -> (i32, i32) {
    %c0_i32 = arith.constant 0 : i32
    %c0_i32_0 = arith.constant 0 : i32
    return %c0_i32, %arg0 : i32, i32
  }
}

module attributes {stable_mosaic.version = 11 : i64} {
  func.func @_attn_kernel(%arg0: i32, %arg1: memref<8x2x128xf32, #tpu.memory_space<vmem>>, %arg2: memref<2x8x128xf32, #tpu.memory_space<vmem>>, %arg3: memref<8x16x128xf32, #tpu.memory_space<vmem>>, %arg4: memref<8x16x128xf32, #tpu.memory_space<vmem>>) attributes {dimension_semantics = [#tpu.dimension_semantics<parallel>], iteration_bounds = array<i64: 1>, scalar_prefetch = 0 : i64, scratch_operands = 0 : i64, tpu.core_type = #tpu.core_type<tc>, window_params = [{transform_indices = @transform_0, window_bounds = array<i64: 8, 2, 128>}, {transform_indices = @transform_1, window_bounds = array<i64: 2, 8, 128>}, {transform_indices = @transform_2, window_bounds = array<i64: 8, 16, 128>}, {transform_indices = @transform_3, window_bounds = array<i64: 8, 16, 128>}]} {
    %c0 = arith.constant 0 : index
    %c0_0 = arith.constant 0 : index
    %c0_1 = arith.constant 0 : index
    %0 = vector.load %arg1[%c0, %c0_0, %c0_1] : memref<8x2x128xf32, #tpu.memory_space<vmem>>, vector<8x2x128xf32>
    %cst = arith.constant 0.707106769 : f32
    %1 = vector.broadcast %cst : f32 to vector<8x2x128xf32>
    %2 = arith.mulf %0, %1 : vector<8x2x128xf32>
    %c0_2 = arith.constant 0 : index
    %c0_3 = arith.constant 0 : index
    %c0_4 = arith.constant 0 : index
    %3 = vector.load %arg2[%c0_2, %c0_3, %c0_4] : memref<2x8x128xf32, #tpu.memory_space<vmem>>, vector<2x8x128xf32>
    %c0_5 = arith.constant 0 : index
    %c0_6 = arith.constant 0 : index
    %c0_7 = arith.constant 0 : index
    %4 = vector.load %arg3[%c0_5, %c0_6, %c0_7] : memref<8x16x128xf32, #tpu.memory_space<vmem>>, vector<8x16x128xf32>
    %5 = vector.extract_strided_slice %2 {offsets = [0, 0, 0], sizes = [8, 1, 128], strides = [1, 1, 1]} : vector<8x2x128xf32> to vector<8x1x128xf32>
    %6 = vector.extract_strided_slice %3 {offsets = [0, 0, 0], sizes = [1, 8, 128], strides = [1, 1, 1]} : vector<2x8x128xf32> to vector<1x8x128xf32>
    %7 = vector.broadcast %5 : vector<8x1x128xf32> to vector<8x8x128xf32>
    %8 = vector.broadcast %6 : vector<1x8x128xf32> to vector<8x8x128xf32>
    %9 = arith.mulf %7, %8 : vector<8x8x128xf32>
    %10 = vector.extract_strided_slice %2 {offsets = [0, 1, 0], sizes = [8, 1, 128], strides = [1, 1, 1]} : vector<8x2x128xf32> to vector<8x1x128xf32>
    %11 = vector.extract_strided_slice %3 {offsets = [1, 0, 0], sizes = [1, 8, 128], strides = [1, 1, 1]} : vector<2x8x128xf32> to vector<1x8x128xf32>
    %12 = vector.broadcast %10 : vector<8x1x128xf32> to vector<8x8x128xf32>
    %13 = vector.broadcast %11 : vector<1x8x128xf32> to vector<8x8x128xf32>
    %14 = arith.mulf %12, %13 : vector<8x8x128xf32>
    %15 = arith.addf %9, %14 : vector<8x8x128xf32>
    %cst_8 = arith.constant dense<0xFF800000> : vector<8x128xf32>
    %16 = vector.multi_reduction <maximumf>, %15, %cst_8 [1] : vector<8x8x128xf32> to vector<8x128xf32>
    %17 = vector.shape_cast %16 : vector<8x128xf32> to vector<8x1x128xf32>
    %18 = vector.broadcast %17 : vector<8x1x128xf32> to vector<8x8x128xf32>
    %19 = arith.subf %15, %18 : vector<8x8x128xf32>
    %20 = math.exp %19 : vector<8x8x128xf32>
    %cst_9 = arith.constant dense<0.000000e+00> : vector<8x128xf32>
    %21 = vector.multi_reduction <add>, %20, %cst_9 [1] : vector<8x8x128xf32> to vector<8x128xf32>
    %22 = vector.shape_cast %21 : vector<8x128xf32> to vector<8x1x128xf32>
    %23 = vector.broadcast %22 : vector<8x1x128xf32> to vector<8x8x128xf32>
    %24 = arith.divf %20, %23 : vector<8x8x128xf32>
    %25 = vector.extract_strided_slice %24 {offsets = [0, 0, 0], sizes = [8, 1, 128], strides = [1, 1, 1]} : vector<8x8x128xf32> to vector<8x1x128xf32>
    %26 = vector.extract_strided_slice %4 {offsets = [0, 0, 0], sizes = [1, 16, 128], strides = [1, 1, 1]} : vector<8x16x128xf32> to vector<1x16x128xf32>
    %27 = vector.broadcast %25 : vector<8x1x128xf32> to vector<8x16x128xf32>
    %28 = vector.broadcast %26 : vector<1x16x128xf32> to vector<8x16x128xf32>
    %29 = arith.mulf %27, %28 : vector<8x16x128xf32>
    %30 = vector.extract_strided_slice %24 {offsets = [0, 1, 0], sizes = [8, 1, 128], strides = [1, 1, 1]} : vector<8x8x128xf32> to vector<8x1x128xf32>
    %31 = vector.extract_strided_slice %4 {offsets = [1, 0, 0], sizes = [1, 16, 128], strides = [1, 1, 1]} : vector<8x16x128xf32> to vector<1x16x128xf32>
    %32 = vector.broadcast %30 : vector<8x1x128xf32> to vector<8x16x128xf32>
    %33 = vector.broadcast %31 : vector<1x16x128xf32> to vector<8x16x128xf32>
    %34 = arith.mulf %32, %33 : vector<8x16x128xf32>
    %35 = arith.addf %29, %34 : vector<8x16x128xf32>
    %36 = vector.extract_strided_slice %24 {offsets = [0, 2, 0], sizes = [8, 1, 128], strides = [1, 1, 1]} : vector<8x8x128xf32> to vector<8x1x128xf32>
    %37 = vector.extract_strided_slice %4 {offsets = [2, 0, 0], sizes = [1, 16, 128], strides = [1, 1, 1]} : vector<8x16x128xf32> to vector<1x16x128xf32>
    %38 = vector.broadcast %36 : vector<8x1x128xf32> to vector<8x16x128xf32>
    %39 = vector.broadcast %37 : vector<1x16x128xf32> to vector<8x16x128xf32>
    %40 = arith.mulf %38, %39 : vector<8x16x128xf32>
    %41 = arith.addf %35, %40 : vector<8x16x128xf32>
    %42 = vector.extract_strided_slice %24 {offsets = [0, 3, 0], sizes = [8, 1, 128], strides = [1, 1, 1]} : vector<8x8x128xf32> to vector<8x1x128xf32>
    %43 = vector.extract_strided_slice %4 {offsets = [3, 0, 0], sizes = [1, 16, 128], strides = [1, 1, 1]} : vector<8x16x128xf32> to vector<1x16x128xf32>
    %44 = vector.broadcast %42 : vector<8x1x128xf32> to vector<8x16x128xf32>
    %45 = vector.broadcast %43 : vector<1x16x128xf32> to vector<8x16x128xf32>
    %46 = arith.mulf %44, %45 : vector<8x16x128xf32>
    %47 = arith.addf %41, %46 : vector<8x16x128xf32>
    %48 = vector.extract_strided_slice %24 {offsets = [0, 4, 0], sizes = [8, 1, 128], strides = [1, 1, 1]} : vector<8x8x128xf32> to vector<8x1x128xf32>
    %49 = vector.extract_strided_slice %4 {offsets = [4, 0, 0], sizes = [1, 16, 128], strides = [1, 1, 1]} : vector<8x16x128xf32> to vector<1x16x128xf32>
    %50 = vector.broadcast %48 : vector<8x1x128xf32> to vector<8x16x128xf32>
    %51 = vector.broadcast %49 : vector<1x16x128xf32> to vector<8x16x128xf32>
    %52 = arith.mulf %50, %51 : vector<8x16x128xf32>
    %53 = arith.addf %47, %52 : vector<8x16x128xf32>
    %54 = vector.extract_strided_slice %24 {offsets = [0, 5, 0], sizes = [8, 1, 128], strides = [1, 1, 1]} : vector<8x8x128xf32> to vector<8x1x128xf32>
    %55 = vector.extract_strided_slice %4 {offsets = [5, 0, 0], sizes = [1, 16, 128], strides = [1, 1, 1]} : vector<8x16x128xf32> to vector<1x16x128xf32>
    %56 = vector.broadcast %54 : vector<8x1x128xf32> to vector<8x16x128xf32>
    %57 = vector.broadcast %55 : vector<1x16x128xf32> to vector<8x16x128xf32>
    %58 = arith.mulf %56, %57 : vector<8x16x128xf32>
    %59 = arith.addf %53, %58 : vector<8x16x128xf32>
    %60 = vector.extract_strided_slice %24 {offsets = [0, 6, 0], sizes = [8, 1, 128], strides = [1, 1, 1]} : vector<8x8x128xf32> to vector<8x1x128xf32>
    %61 = vector.extract_strided_slice %4 {offsets = [6, 0, 0], sizes = [1, 16, 128], strides = [1, 1, 1]} : vector<8x16x128xf32> to vector<1x16x128xf32>
    %62 = vector.broadcast %60 : vector<8x1x128xf32> to vector<8x16x128xf32>
    %63 = vector.broadcast %61 : vector<1x16x128xf32> to vector<8x16x128xf32>
    %64 = arith.mulf %62, %63 : vector<8x16x128xf32>
    %65 = arith.addf %59, %64 : vector<8x16x128xf32>
    %66 = vector.extract_strided_slice %24 {offsets = [0, 7, 0], sizes = [8, 1, 128], strides = [1, 1, 1]} : vector<8x8x128xf32> to vector<8x1x128xf32>
    %67 = vector.extract_strided_slice %4 {offsets = [7, 0, 0], sizes = [1, 16, 128], strides = [1, 1, 1]} : vector<8x16x128xf32> to vector<1x16x128xf32>
    %68 = vector.broadcast %66 : vector<8x1x128xf32> to vector<8x16x128xf32>
    %69 = vector.broadcast %67 : vector<1x16x128xf32> to vector<8x16x128xf32>
    %70 = arith.mulf %68, %69 : vector<8x16x128xf32>
    %71 = arith.addf %65, %70 : vector<8x16x128xf32>
    %c0_10 = arith.constant 0 : index
    %c0_11 = arith.constant 0 : index
    %c0_12 = arith.constant 0 : index
    %72 = vector.load %arg4[%c0_10, %c0_11, %c0_12] : memref<8x16x128xf32, #tpu.memory_space<vmem>>, vector<8x16x128xf32>
    tpu.vector_store %arg4[%c0_10, %c0_11, %c0_12], %71 {strides = array<i32>} : memref<8x16x128xf32, #tpu.memory_space<vmem>>, vector<8x16x128xf32>,
    return
  }
  func.func @transform_0(%arg0: i32) -> (i32, i32, i32) {
    %c0_i32 = arith.constant 0 : i32
    %c0_i32_0 = arith.constant 0 : i32
    %c0_i32_1 = arith.constant 0 : i32
    return %c0_i32, %c0_i32_0, %arg0 : i32, i32, i32
  }
  func.func @transform_1(%arg0: i32) -> (i32, i32, i32) {
    %c0_i32 = arith.constant 0 : i32
    %c0_i32_0 = arith.constant 0 : i32
    %c0_i32_1 = arith.constant 0 : i32
    return %c0_i32, %c0_i32_0, %arg0 : i32, i32, i32
  }
  func.func @transform_2(%arg0: i32) -> (i32, i32, i32) {
    %c0_i32 = arith.constant 0 : i32
    %c0_i32_0 = arith.constant 0 : i32
    %c0_i32_1 = arith.constant 0 : i32
    return %c0_i32, %c0_i32_0, %arg0 : i32, i32, i32
  }
  func.func @transform_3(%arg0: i32) -> (i32, i32, i32) {
    %c0_i32 = arith.constant 0 : i32
    %c0_i32_0 = arith.constant 0 : i32
    %c0_i32_1 = arith.constant 0 : i32
    return %c0_i32, %c0_i32_0, %arg0 : i32, i32, i32
  }
}

</mosaic_0001>

<llo_original>
// kernel: issa_forward.3
$region0: #{issa_forward.3}
  #allocation0 [shape = 'u32[]', space=smem, size = 0x4, offset = 0x4, fixed_abs, tag = 'smem constant byte address 0x4 - core index']
  #allocation1 [shape = 'u32[144,128]{1,0:T(1,128)}', space=vmem, size = 0x12000, scoped, tag = 'internal scratch']
  %s0 = inlined_call_operand.vmem [shape: f32[8,2,128], index: 0, kind: input, shape index: {}]
  %s1 = inlined_call_operand.vmem [shape: f32[2,8,128], index: 1, kind: input, shape index: {}]
  %s2 = inlined_call_operand.vmem [shape: f32[8,16,128], index: 2, kind: input, shape index: {}]
  %s3 = inlined_call_operand.vmem [shape: f32[8,16,128], index: 3, kind: output, shape index: {}]
  %s4 = sld [smem:[#allocation0]]
  $region22: #{issa_forward.3} parent=0
    _
  %s6 = ssub.s32 1, %s4
  %s7 = scalar_select 0, %s6, %s4
  // Predicated region
  $region2: #{issa_forward.3} parent=0 // pred_check
    _
  $region3: #{issa_forward.3} parent=0 // pred_check_branch
    %9 = sbr.rel (0) target = $region5
  $region4: #{issa_forward.3} parent=0 // pred_region
    _
  $region5: #{issa_forward.3} parent=0 // pred_fallthru
    _
  // Predicated region
  $region6: #{issa_forward.3} parent=0 // pred_check
    _
  $region7: #{issa_forward.3} parent=0 // pred_check_branch
    %11 = sbr.rel (0) target = $region9
  $region8: #{issa_forward.3} parent=0 // pred_region
    _
  $region9: #{issa_forward.3} parent=0 // pred_fallthru
    _
  // Predicated region
  $region10: #{issa_forward.3} parent=0 // pred_check
    _
  $region11: #{issa_forward.3} parent=0 // pred_check_branch
    %13 = sbr.rel (0) target = $region13
  $region12: #{issa_forward.3} parent=0 // pred_region
    _
  $region13: #{issa_forward.3} parent=0 // pred_fallthru
    _
  %v14 = vld [vmem:[%s0] sm:$0x3]
  %v15 = vld [vmem:[%s0 + $0x2] sm:$0x3]
  %v16 = vld [vmem:[%s0 + $0x4] sm:$0x3]
  %v17 = vld [vmem:[%s0 + $0x6] sm:$0x3]
  %v18 = vld [vmem:[%s0 + $0x8] sm:$0x3]
  %v19 = vld [vmem:[%s0 + $0xa] sm:$0x3]
  %v20 = vld [vmem:[%s0 + $0xc] sm:$0x3]
  %v21 = vld [vmem:[%s0 + $0xe] sm:$0x3]
  %v22 = vmul.f32 %v14, 0.70710677
  %v23 = vmul.f32 %v15, 0.70710677
  %v24 = vmul.f32 %v16, 0.70710677
  %v25 = vmul.f32 %v17, 0.70710677
  %v26 = vmul.f32 %v18, 0.70710677
  %v27 = vmul.f32 %v19, 0.70710677
  %v28 = vmul.f32 %v20, 0.70710677
  %v29 = vmul.f32 %v21, 0.70710677
  %v30 = vld [vmem:[%s1] sm:$0xff]
  %v31 = vld [vmem:[%s1 + $0x8] sm:$0xff]
  %v32 = vld [vmem:[%s2] sm:$0xff]
  %v33 = vld [vmem:[%s2 + $0x8] sm:$0xff]
  %v34 = vld [vmem:[%s2 + $0x10] sm:$0xff]
  %v35 = vld [vmem:[%s2 + $0x18] sm:$0xff]
  %v36 = vld [vmem:[%s2 + $0x20] sm:$0xff]
  %v37 = vld [vmem:[%s2 + $0x28] sm:$0xff]
  %v38 = vld [vmem:[%s2 + $0x30] sm:$0xff]
  %v39 = vld [vmem:[%s2 + $0x38] sm:$0xff]
  %v40 = vld [vmem:[%s2 + $0x40] sm:$0xff]
  %v41 = vld [vmem:[%s2 + $0x48] sm:$0xff]
  %v42 = vld [vmem:[%s2 + $0x50] sm:$0xff]
  %v43 = vld [vmem:[%s2 + $0x58] sm:$0xff]
  %v44 = vld [vmem:[%s2 + $0x60] sm:$0xff]
  %v45 = vld [vmem:[%s2 + $0x68] sm:$0xff]
  %v46 = vld [vmem:[%s2 + $0x70] sm:$0xff]
  %v47 = vld [vmem:[%s2 + $0x78] sm:$0xff]
  %v48 = vlaneseq
  %v49 = vshrl.u32 %v48, 7
  %v50 = vsub.s32 0, %v49
  %v51 = vrot.slane %v22, %v50
  %v52 = vlaneseq
  %v53 = vshrl.u32 %v52, 7
  %v54 = vsub.s32 0, %v53
  %v55 = vrot.slane %v23, %v54
  %v56 = vlaneseq
  %v57 = vshrl.u32 %v56, 7
  %v58 = vsub.s32 0, %v57
  %v59 = vrot.slane %v24, %v58
  %v60 = vlaneseq
  %v61 = vshrl.u32 %v60, 7
  %v62 = vsub.s32 0, %v61
  %v63 = vrot.slane %v25, %v62
  %v64 = vlaneseq
  %v65 = vshrl.u32 %v64, 7
  %v66 = vsub.s32 0, %v65
  %v67 = vrot.slane %v26, %v66
  %v68 = vlaneseq
  %v69 = vshrl.u32 %v68, 7
  %v70 = vsub.s32 0, %v69
  %v71 = vrot.slane %v27, %v70
  %v72 = vlaneseq
  %v73 = vshrl.u32 %v72, 7
  %v74 = vsub.s32 0, %v73
  %v75 = vrot.slane %v28, %v74
  %v76 = vlaneseq
  %v77 = vshrl.u32 %v76, 7
  %v78 = vsub.s32 0, %v77
  %v79 = vrot.slane %v29, %v78
  %v80 = vmul.f32 %v51, %v30
  %v81 = vmul.f32 %v55, %v30
  %v82 = vmul.f32 %v59, %v30
  %v83 = vmul.f32 %v63, %v30
  %v84 = vmul.f32 %v67, %v30
  %v85 = vmul.f32 %v71, %v30
  %v86 = vmul.f32 %v75, %v30
  %v87 = vmul.f32 %v79, %v30
  %v88 = vlaneseq
  %v89 = vshrl.u32 %v88, 7
  %v90 = vsub.s32 1, %v89
  %v91 = vrot.slane %v22, %v90
  %v92 = vlaneseq
  %v93 = vshrl.u32 %v92, 7
  %v94 = vsub.s32 1, %v93
  %v95 = vrot.slane %v23, %v94
  %v96 = vlaneseq
  %v97 = vshrl.u32 %v96, 7
  %v98 = vsub.s32 1, %v97
  %v99 = vrot.slane %v24, %v98
  %v100 = vlaneseq
  %v101 = vshrl.u32 %v100, 7
  %v102 = vsub.s32 1, %v101
  %v103 = vrot.slane %v25, %v102
  %v104 = vlaneseq
  %v105 = vshrl.u32 %v104, 7
  %v106 = vsub.s32 1, %v105
  %v107 = vrot.slane %v26, %v106
  %v108 = vlaneseq
  %v109 = vshrl.u32 %v108, 7
  %v110 = vsub.s32 1, %v109
  %v111 = vrot.slane %v27, %v110
  %v112 = vlaneseq
  %v113 = vshrl.u32 %v112, 7
  %v114 = vsub.s32 1, %v113
  %v115 = vrot.slane %v28, %v114
  %v116 = vlaneseq
  %v117 = vshrl.u32 %v116, 7
  %v118 = vsub.s32 1, %v117
  %v119 = vrot.slane %v29, %v118
  %v120 = vmul.f32 %v91, %v31
  %v121 = vmul.f32 %v95, %v31
  %v122 = vmul.f32 %v99, %v31
  %v123 = vmul.f32 %v103, %v31
  %v124 = vmul.f32 %v107, %v31
  %v125 = vmul.f32 %v111, %v31
  %v126 = vmul.f32 %v115, %v31
  %v127 = vmul.f32 %v119, %v31
  %v128 = vadd.f32 %v80, %v120
  %v129 = vadd.f32 %v81, %v121
  %v130 = vadd.f32 %v82, %v122
  %v131 = vadd.f32 %v83, %v123
  %v132 = vadd.f32 %v84, %v124
  %v133 = vadd.f32 %v85, %v125
  %v134 = vadd.f32 %v86, %v126
  %v135 = vadd.f32 %v87, %v127
  %v136 = vrot.slane %v128, 4
  %v137 = vmax.f32 %v128, %v136
  %v138 = vrot.slane %v137, 2
  %v139 = vmax.f32 %v137, %v138
  %v140 = vrot.slane %v139, 1
  %v141 = vmax.f32 %v139, %v140
  %v142 = vrot.slane %v129, 4
  %v143 = vmax.f32 %v129, %v142
  %v144 = vrot.slane %v143, 2
  %v145 = vmax.f32 %v143, %v144
  %v146 = vrot.slane %v145, 1
  %v147 = vmax.f32 %v145, %v146
  %v148 = vrot.slane %v130, 4
  %v149 = vmax.f32 %v130, %v148
  %v150 = vrot.slane %v149, 2
  %v151 = vmax.f32 %v149, %v150
  %v152 = vrot.slane %v151, 1
  %v153 = vmax.f32 %v151, %v152
  %v154 = vrot.slane %v131, 4
  %v155 = vmax.f32 %v131, %v154
  %v156 = vrot.slane %v155, 2
  %v157 = vmax.f32 %v155, %v156
  %v158 = vrot.slane %v157, 1
  %v159 = vmax.f32 %v157, %v158
  %v160 = vrot.slane %v132, 4
  %v161 = vmax.f32 %v132, %v160
  %v162 = vrot.slane %v161, 2
  %v163 = vmax.f32 %v161, %v162
  %v164 = vrot.slane %v163, 1
  %v165 = vmax.f32 %v163, %v164
  %v166 = vrot.slane %v133, 4
  %v167 = vmax.f32 %v133, %v166
  %v168 = vrot.slane %v167, 2
  %v169 = vmax.f32 %v167, %v168
  %v170 = vrot.slane %v169, 1
  %v171 = vmax.f32 %v169, %v170
  %v172 = vrot.slane %v134, 4
  %v173 = vmax.f32 %v134, %v172
  %v174 = vrot.slane %v173, 2
  %v175 = vmax.f32 %v173, %v174
  %v176 = vrot.slane %v175, 1
  %v177 = vmax.f32 %v175, %v176
  %v178 = vrot.slane %v135, 4
  %v179 = vmax.f32 %v135, %v178
  %v180 = vrot.slane %v179, 2
  %v181 = vmax.f32 %v179, %v180
  %v182 = vrot.slane %v181, 1
  %v183 = vmax.f32 %v181, %v182
  %v184 = vsub.f32 %v128, %v141
  %v185 = vsub.f32 %v129, %v147
  %v186 = vsub.f32 %v130, %v153
  %v187 = vsub.f32 %v131, %v159
  %v188 = vsub.f32 %v132, %v165
  %v189 = vsub.f32 %v133, %v171
  %v190 = vsub.f32 %v134, %v177
  %v191 = vsub.f32 %v135, %v183
  %v192 = vmul.f32 %v184, 1.442695
  %v193 = vpow.pop %v192
  %v194 = vmul.f32 %v185, 1.442695
  %v195 = vpow.pop %v194
  %v196 = vmul.f32 %v186, 1.442695
  %v197 = vpow.pop %v196
  %v198 = vmul.f32 %v187, 1.442695
  %v199 = vpow.pop %v198
  %v200 = vmul.f32 %v188, 1.442695
  %v201 = vpow.pop %v200
  %v202 = vmul.f32 %v189, 1.442695
  %v203 = vpow.pop %v202
  %v204 = vmul.f32 %v190, 1.442695
  %v205 = vpow.pop %v204
  %v206 = vmul.f32 %v191, 1.442695
  %v207 = vpow.pop %v206
  %v208 = vrot.slane %v193, 4
  %v209 = vadd.f32 %v193, %v208
  %v210 = vrot.slane %v209, 2
  %v211 = vadd.f32 %v209, %v210
  %v212 = vrot.slane %v211, 1
  %v213 = vadd.f32 %v211, %v212
  %v214 = vrot.slane %v195, 4
  %v215 = vadd.f32 %v195, %v214
  %v216 = vrot.slane %v215, 2
  %v217 = vadd.f32 %v215, %v216
  %v218 = vrot.slane %v217, 1
  %v219 = vadd.f32 %v217, %v218
  %v220 = vrot.slane %v197, 4
  %v221 = vadd.f32 %v197, %v220
  %v222 = vrot.slane %v221, 2
  %v223 = vadd.f32 %v221, %v222
  %v224 = vrot.slane %v223, 1
  %v225 = vadd.f32 %v223, %v224
  %v226 = vrot.slane %v199, 4
  %v227 = vadd.f32 %v199, %v226
  %v228 = vrot.slane %v227, 2
  %v229 = vadd.f32 %v227, %v228
  %v230 = vrot.slane %v229, 1
  %v231 = vadd.f32 %v229, %v230
  %v232 = vrot.slane %v201, 4
  %v233 = vadd.f32 %v201, %v232
  %v234 = vrot.slane %v233, 2
  %v235 = vadd.f32 %v233, %v234
  %v236 = vrot.slane %v235, 1
  %v237 = vadd.f32 %v235, %v236
  %v238 = vrot.slane %v203, 4
  %v239 = vadd.f32 %v203, %v238
  %v240 = vrot.slane %v239, 2
  %v241 = vadd.f32 %v239, %v240
  %v242 = vrot.slane %v241, 1
  %v243 = vadd.f32 %v241, %v242
  %v244 = vrot.slane %v205, 4
  %v245 = vadd.f32 %v205, %v244
  %v246 = vrot.slane %v245, 2
  %v247 = vadd.f32 %v245, %v246
  %v248 = vrot.slane %v247, 1
  %v249 = vadd.f32 %v247, %v248
  %v250 = vrot.slane %v207, 4
  %v251 = vadd.f32 %v207, %v250
  %v252 = vrot.slane %v251, 2
  %v253 = vadd.f32 %v251, %v252
  %v254 = vrot.slane %v253, 1
  %v255 = vadd.f32 %v253, %v254
  %v256 = vrcp.pop %v213
  %v257 = vmul.f32 %v193, %v256
  %v258 = vrcp.pop %v219
  %v259 = vmul.f32 %v195, %v258
  %v260 = vrcp.pop %v225
  %v261 = vmul.f32 %v197, %v260
  %v262 = vrcp.pop %v231
  %v263 = vmul.f32 %v199, %v262
  %v264 = vrcp.pop %v237
  %v265 = vmul.f32 %v201, %v264
  %v266 = vrcp.pop %v243
  %v267 = vmul.f32 %v203, %v266
  %v268 = vrcp.pop %v249
  %v269 = vmul.f32 %v205, %v268
  %v270 = vrcp.pop %v255
  %v271 = vmul.f32 %v207, %v270
  %v272 = vlaneseq
  %v273 = vshrl.u32 %v272, 7
  %v274 = vsub.s32 0, %v273
  %v275 = vrot.slane %v257, %v274
  %v276 = vlaneseq
  %v277 = vshrl.u32 %v276, 7
  %v278 = vsub.s32 0, %v277
  %v279 = vrot.slane %v259, %v278
  %v280 = vlaneseq
  %v281 = vshrl.u32 %v280, 7
  %v282 = vsub.s32 0, %v281
  %v283 = vrot.slane %v261, %v282
  %v284 = vlaneseq
  %v285 = vshrl.u32 %v284, 7
  %v286 = vsub.s32 0, %v285
  %v287 = vrot.slane %v263, %v286
  %v288 = vlaneseq
  %v289 = vshrl.u32 %v288, 7
  %v290 = vsub.s32 0, %v289
  %v291 = vrot.slane %v265, %v290
  %v292 = vlaneseq
  %v293 = vshrl.u32 %v292, 7
  %v294 = vsub.s32 0, %v293
  %v295 = vrot.slane %v267, %v294
  %v296 = vlaneseq
  %v297 = vshrl.u32 %v296, 7
  %v298 = vsub.s32 0, %v297
  %v299 = vrot.slane %v269, %v298
  %v300 = vlaneseq
  %v301 = vshrl.u32 %v300, 7
  %v302 = vsub.s32 0, %v301
  %v303 = vrot.slane %v271, %v302
  %v304 = vmul.f32 %v275, %v32
  %v305 = vmul.f32 %v275, %v33
  %v306 = vmul.f32 %v279, %v32
  %v307 = vmul.f32 %v279, %v33
  %v308 = vmul.f32 %v283, %v32
  %v309 = vmul.f32 %v283, %v33
  %v310 = vmul.f32 %v287, %v32
  %v311 = vmul.f32 %v287, %v33
  %v312 = vmul.f32 %v291, %v32
  %v313 = vmul.f32 %v291, %v33
  %v314 = vmul.f32 %v295, %v32
  %v315 = vmul.f32 %v295, %v33
  %v316 = vmul.f32 %v299, %v32
  %v317 = vmul.f32 %v299, %v33
  %v318 = vmul.f32 %v303, %v32
  %v319 = vmul.f32 %v303, %v33
  %v320 = vlaneseq
  %v321 = vshrl.u32 %v320, 7
  %v322 = vsub.s32 1, %v321
  %v323 = vrot.slane %v257, %v322
  %v324 = vlaneseq
  %v325 = vshrl.u32 %v324, 7
  %v326 = vsub.s32 1, %v325
  %v327 = vrot.slane %v259, %v326
  %v328 = vlaneseq
  %v329 = vshrl.u32 %v328, 7
  %v330 = vsub.s32 1, %v329
  %v331 = vrot.slane %v261, %v330
  %v332 = vlaneseq
  %v333 = vshrl.u32 %v332, 7
  %v334 = vsub.s32 1, %v333
  %v335 = vrot.slane %v263, %v334
  %v336 = vlaneseq
  %v337 = vshrl.u32 %v336, 7
  %v338 = vsub.s32 1, %v337
  %v339 = vrot.slane %v265, %v338
  %v340 = vlaneseq
  %v341 = vshrl.u32 %v340, 7
  %v342 = vsub.s32 1, %v341
  %v343 = vrot.slane %v267, %v342
  %v344 = vlaneseq
  %v345 = vshrl.u32 %v344, 7
  %v346 = vsub.s32 1, %v345
  %v347 = vrot.slane %v269, %v346
  %v348 = vlaneseq
  %v349 = vshrl.u32 %v348, 7
  %v350 = vsub.s32 1, %v349
  %v351 = vrot.slane %v271, %v350
  %v352 = vmul.f32 %v323, %v34
  %v353 = vmul.f32 %v323, %v35
  %v354 = vmul.f32 %v327, %v34
  %v355 = vmul.f32 %v327, %v35
  %v356 = vmul.f32 %v331, %v34
  %v357 = vmul.f32 %v331, %v35
  %v358 = vmul.f32 %v335, %v34
  %v359 = vmul.f32 %v335, %v35
  %v360 = vmul.f32 %v339, %v34
  %v361 = vmul.f32 %v339, %v35
  %v362 = vmul.f32 %v343, %v34
  %v363 = vmul.f32 %v343, %v35
  %v364 = vmul.f32 %v347, %v34
  %v365 = vmul.f32 %v347, %v35
  %v366 = vmul.f32 %v351, %v34
  %v367 = vmul.f32 %v351, %v35
  %v368 = vadd.f32 %v304, %v352
  %v369 = vadd.f32 %v305, %v353
  %v370 = vadd.f32 %v306, %v354
  %v371 = vadd.f32 %v307, %v355
  %v372 = vadd.f32 %v308, %v356
  %v373 = vadd.f32 %v309, %v357
  %v374 = vadd.f32 %v310, %v358
  %v375 = vadd.f32 %v311, %v359
  %v376 = vadd.f32 %v312, %v360
  %v377 = vadd.f32 %v313, %v361
  %v378 = vadd.f32 %v314, %v362
  %v379 = vadd.f32 %v315, %v363
  %v380 = vadd.f32 %v316, %v364
  %v381 = vadd.f32 %v317, %v365
  %v382 = vadd.f32 %v318, %v366
  %v383 = vadd.f32 %v319, %v367
  %v384 = vlaneseq
  %v385 = vshrl.u32 %v384, 7
  %v386 = vsub.s32 2, %v385
  %v387 = vrot.slane %v257, %v386
  %v388 = vlaneseq
  %v389 = vshrl.u32 %v388, 7
  %v390 = vsub.s32 2, %v389
  %v391 = vrot.slane %v259, %v390
  %v392 = vlaneseq
  %v393 = vshrl.u32 %v392, 7
  %v394 = vsub.s32 2, %v393
  %v395 = vrot.slane %v261, %v394
  %v396 = vlaneseq
  %v397 = vshrl.u32 %v396, 7
  %v398 = vsub.s32 2, %v397
  %v399 = vrot.slane %v263, %v398
  %v400 = vlaneseq
  %v401 = vshrl.u32 %v400, 7
  %v402 = vsub.s32 2, %v401
  %v403 = vrot.slane %v265, %v402
  %v404 = vlaneseq
  %v405 = vshrl.u32 %v404, 7
  %v406 = vsub.s32 2, %v405
  %v407 = vrot.slane %v267, %v406
  %v408 = vlaneseq
  %v409 = vshrl.u32 %v408, 7
  %v410 = vsub.s32 2, %v409
  %v411 = vrot.slane %v269, %v410
  %v412 = vlaneseq
  %v413 = vshrl.u32 %v412, 7
  %v414 = vsub.s32 2, %v413
  %v415 = vrot.slane %v271, %v414
  %v416 = vmul.f32 %v387, %v36
  %v417 = vmul.f32 %v387, %v37
  %v418 = vmul.f32 %v391, %v36
  %v419 = vmul.f32 %v391, %v37
  %v420 = vmul.f32 %v395, %v36
  %v421 = vmul.f32 %v395, %v37
  %v422 = vmul.f32 %v399, %v36
  %v423 = vmul.f32 %v399, %v37
  %v424 = vmul.f32 %v403, %v36
  %v425 = vmul.f32 %v403, %v37
  %v426 = vmul.f32 %v407, %v36
  %v427 = vmul.f32 %v407, %v37
  %v428 = vmul.f32 %v411, %v36
  %v429 = vmul.f32 %v411, %v37
  %v430 = vmul.f32 %v415, %v36
  %v431 = vmul.f32 %v415, %v37
  %v432 = vadd.f32 %v368, %v416
  %v433 = vadd.f32 %v369, %v417
  %v434 = vadd.f32 %v370, %v418
  %v435 = vadd.f32 %v371, %v419
  %v436 = vadd.f32 %v372, %v420
  %v437 = vadd.f32 %v373, %v421
  %v438 = vadd.f32 %v374, %v422
  %v439 = vadd.f32 %v375, %v423
  %v440 = vadd.f32 %v376, %v424
  %v441 = vadd.f32 %v377, %v425
  %v442 = vadd.f32 %v378, %v426
  %v443 = vadd.f32 %v379, %v427
  %v444 = vadd.f32 %v380, %v428
  %v445 = vadd.f32 %v381, %v429
  %v446 = vadd.f32 %v382, %v430
  %v447 = vadd.f32 %v383, %v431
  %v448 = vlaneseq
  %v449 = vshrl.u32 %v448, 7
  %v450 = vsub.s32 3, %v449
  %v451 = vrot.slane %v257, %v450
  %v452 = vlaneseq
  %v453 = vshrl.u32 %v452, 7
  %v454 = vsub.s32 3, %v453
  %v455 = vrot.slane %v259, %v454
  %v456 = vlaneseq
  %v457 = vshrl.u32 %v456, 7
  %v458 = vsub.s32 3, %v457
  %v459 = vrot.slane %v261, %v458
  %v460 = vlaneseq
  %v461 = vshrl.u32 %v460, 7
  %v462 = vsub.s32 3, %v461
  %v463 = vrot.slane %v263, %v462
  %v464 = vlaneseq
  %v465 = vshrl.u32 %v464, 7
  %v466 = vsub.s32 3, %v465
  %v467 = vrot.slane %v265, %v466
  %v468 = vlaneseq
  %v469 = vshrl.u32 %v468, 7
  %v470 = vsub.s32 3, %v469
  %v471 = vrot.slane %v267, %v470
  %v472 = vlaneseq
  %v473 = vshrl.u32 %v472, 7
  %v474 = vsub.s32 3, %v473
  %v475 = vrot.slane %v269, %v474
  %v476 = vlaneseq
  %v477 = vshrl.u32 %v476, 7
  %v478 = vsub.s32 3, %v477
  %v479 = vrot.slane %v271, %v478
  %v480 = vmul.f32 %v451, %v38
  %v481 = vmul.f32 %v451, %v39
  %v482 = vmul.f32 %v455, %v38
  %v483 = vmul.f32 %v455, %v39
  %v484 = vmul.f32 %v459, %v38
  %v485 = vmul.f32 %v459, %v39
  %v486 = vmul.f32 %v463, %v38
  %v487 = vmul.f32 %v463, %v39
  %v488 = vmul.f32 %v467, %v38
  %v489 = vmul.f32 %v467, %v39
  %v490 = vmul.f32 %v471, %v38
  %v491 = vmul.f32 %v471, %v39
  %v492 = vmul.f32 %v475, %v38
  %v493 = vmul.f32 %v475, %v39
  %v494 = vmul.f32 %v479, %v38
  %v495 = vmul.f32 %v479, %v39
  %v496 = vadd.f32 %v432, %v480
  %v497 = vadd.f32 %v433, %v481
  %v498 = vadd.f32 %v434, %v482
  %v499 = vadd.f32 %v435, %v483
  %v500 = vadd.f32 %v436, %v484
  %v501 = vadd.f32 %v437, %v485
  %v502 = vadd.f32 %v438, %v486
  %v503 = vadd.f32 %v439, %v487
  %v504 = vadd.f32 %v440, %v488
  %v505 = vadd.f32 %v441, %v489
  %v506 = vadd.f32 %v442, %v490
  %v507 = vadd.f32 %v443, %v491
  %v508 = vadd.f32 %v444, %v492
  %v509 = vadd.f32 %v445, %v493
  %v510 = vadd.f32 %v446, %v494
  %v511 = vadd.f32 %v447, %v495
  %v512 = vlaneseq
  %v513 = vshrl.u32 %v512, 7
  %v514 = vsub.s32 4, %v513
  %v515 = vrot.slane %v257, %v514
  %v516 = vlaneseq
  %v517 = vshrl.u32 %v516, 7
  %v518 = vsub.s32 4, %v517
  %v519 = vrot.slane %v259, %v518
  %v520 = vlaneseq
  %v521 = vshrl.u32 %v520, 7
  %v522 = vsub.s32 4, %v521
  %v523 = vrot.slane %v261, %v522
  %v524 = vlaneseq
  %v525 = vshrl.u32 %v524, 7
  %v526 = vsub.s32 4, %v525
  %v527 = vrot.slane %v263, %v526
  %v528 = vlaneseq
  %v529 = vshrl.u32 %v528, 7
  %v530 = vsub.s32 4, %v529
  %v531 = vrot.slane %v265, %v530
  %v532 = vlaneseq
  %v533 = vshrl.u32 %v532, 7
  %v534 = vsub.s32 4, %v533
  %v535 = vrot.slane %v267, %v534
  %v536 = vlaneseq
  %v537 = vshrl.u32 %v536, 7
  %v538 = vsub.s32 4, %v537
  %v539 = vrot.slane %v269, %v538
  %v540 = vlaneseq
  %v541 = vshrl.u32 %v540, 7
  %v542 = vsub.s32 4, %v541
  %v543 = vrot.slane %v271, %v542
  %v544 = vmul.f32 %v515, %v40
  %v545 = vmul.f32 %v515, %v41
  %v546 = vmul.f32 %v519, %v40
  %v547 = vmul.f32 %v519, %v41
  %v548 = vmul.f32 %v523, %v40
  %v549 = vmul.f32 %v523, %v41
  %v550 = vmul.f32 %v527, %v40
  %v551 = vmul.f32 %v527, %v41
  %v552 = vmul.f32 %v531, %v40
  %v553 = vmul.f32 %v531, %v41
  %v554 = vmul.f32 %v535, %v40
  %v555 = vmul.f32 %v535, %v41
  %v556 = vmul.f32 %v539, %v40
  %v557 = vmul.f32 %v539, %v41
  %v558 = vmul.f32 %v543, %v40
  %v559 = vmul.f32 %v543, %v41
  %v560 = vadd.f32 %v496, %v544
  %v561 = vadd.f32 %v497, %v545
  %v562 = vadd.f32 %v498, %v546
  %v563 = vadd.f32 %v499, %v547
  %v564 = vadd.f32 %v500, %v548
  %v565 = vadd.f32 %v501, %v549
  %v566 = vadd.f32 %v502, %v550
  %v567 = vadd.f32 %v503, %v551
  %v568 = vadd.f32 %v504, %v552
  %v569 = vadd.f32 %v505, %v553
  %v570 = vadd.f32 %v506, %v554
  %v571 = vadd.f32 %v507, %v555
  %v572 = vadd.f32 %v508, %v556
  %v573 = vadd.f32 %v509, %v557
  %v574 = vadd.f32 %v510, %v558
  %v575 = vadd.f32 %v511, %v559
  %v576 = vlaneseq
  %v577 = vshrl.u32 %v576, 7
  %v578 = vsub.s32 5, %v577
  %v579 = vrot.slane %v257, %v578
  %v580 = vlaneseq
  %v581 = vshrl.u32 %v580, 7
  %v582 = vsub.s32 5, %v581
  %v583 = vrot.slane %v259, %v582
  %v584 = vlaneseq
  %v585 = vshrl.u32 %v584, 7
  %v586 = vsub.s32 5, %v585
  %v587 = vrot.slane %v261, %v586
  %v588 = vlaneseq
  %v589 = vshrl.u32 %v588, 7
  %v590 = vsub.s32 5, %v589
  %v591 = vrot.slane %v263, %v590
  %v592 = vlaneseq
  %v593 = vshrl.u32 %v592, 7
  %v594 = vsub.s32 5, %v593
  %v595 = vrot.slane %v265, %v594
  %v596 = vlaneseq
  %v597 = vshrl.u32 %v596, 7
  %v598 = vsub.s32 5, %v597
  %v599 = vrot.slane %v267, %v598
  %v600 = vlaneseq
  %v601 = vshrl.u32 %v600, 7
  %v602 = vsub.s32 5, %v601
  %v603 = vrot.slane %v269, %v602
  %v604 = vlaneseq
  %v605 = vshrl.u32 %v604, 7
  %v606 = vsub.s32 5, %v605
  %v607 = vrot.slane %v271, %v606
  %v608 = vmul.f32 %v579, %v42
  %v609 = vmul.f32 %v579, %v43
  %v610 = vmul.f32 %v583, %v42
  %v611 = vmul.f32 %v583, %v43
  %v612 = vmul.f32 %v587, %v42
  %v613 = vmul.f32 %v587, %v43
  %v614 = vmul.f32 %v591, %v42
  %v615 = vmul.f32 %v591, %v43
  %v616 = vmul.f32 %v595, %v42
  %v617 = vmul.f32 %v595, %v43
  %v618 = vmul.f32 %v599, %v42
  %v619 = vmul.f32 %v599, %v43
  %v620 = vmul.f32 %v603, %v42
  %v621 = vmul.f32 %v603, %v43
  %v622 = vmul.f32 %v607, %v42
  %v623 = vmul.f32 %v607, %v43
  %v624 = vadd.f32 %v560, %v608
  %v625 = vadd.f32 %v561, %v609
  %v626 = vadd.f32 %v562, %v610
  %v627 = vadd.f32 %v563, %v611
  %v628 = vadd.f32 %v564, %v612
  %v629 = vadd.f32 %v565, %v613
  %v630 = vadd.f32 %v566, %v614
  %v631 = vadd.f32 %v567, %v615
  %v632 = vadd.f32 %v568, %v616
  %v633 = vadd.f32 %v569, %v617
  %v634 = vadd.f32 %v570, %v618
  %v635 = vadd.f32 %v571, %v619
  %v636 = vadd.f32 %v572, %v620
  %v637 = vadd.f32 %v573, %v621
  %v638 = vadd.f32 %v574, %v622
  %v639 = vadd.f32 %v575, %v623
  %v640 = vlaneseq
  %v641 = vshrl.u32 %v640, 7
  %v642 = vsub.s32 6, %v641
  %v643 = vrot.slane %v257, %v642
  %v644 = vlaneseq
  %v645 = vshrl.u32 %v644, 7
  %v646 = vsub.s32 6, %v645
  %v647 = vrot.slane %v259, %v646
  %v648 = vlaneseq
  %v649 = vshrl.u32 %v648, 7
  %v650 = vsub.s32 6, %v649
  %v651 = vrot.slane %v261, %v650
  %v652 = vlaneseq
  %v653 = vshrl.u32 %v652, 7
  %v654 = vsub.s32 6, %v653
  %v655 = vrot.slane %v263, %v654
  %v656 = vlaneseq
  %v657 = vshrl.u32 %v656, 7
  %v658 = vsub.s32 6, %v657
  %v659 = vrot.slane %v265, %v658
  %v660 = vlaneseq
  %v661 = vshrl.u32 %v660, 7
  %v662 = vsub.s32 6, %v661
  %v663 = vrot.slane %v267, %v662
  %v664 = vlaneseq
  %v665 = vshrl.u32 %v664, 7
  %v666 = vsub.s32 6, %v665
  %v667 = vrot.slane %v269, %v666
  %v668 = vlaneseq
  %v669 = vshrl.u32 %v668, 7
  %v670 = vsub.s32 6, %v669
  %v671 = vrot.slane %v271, %v670
  %v672 = vmul.f32 %v643, %v44
  %v673 = vmul.f32 %v643, %v45
  %v674 = vmul.f32 %v647, %v44
  %v675 = vmul.f32 %v647, %v45
  %v676 = vmul.f32 %v651, %v44
  %v677 = vmul.f32 %v651, %v45
  %v678 = vmul.f32 %v655, %v44
  %v679 = vmul.f32 %v655, %v45
  %v680 = vmul.f32 %v659, %v44
  %v681 = vmul.f32 %v659, %v45
  %v682 = vmul.f32 %v663, %v44
  %v683 = vmul.f32 %v663, %v45
  %v684 = vmul.f32 %v667, %v44
  %v685 = vmul.f32 %v667, %v45
  %v686 = vmul.f32 %v671, %v44
  %v687 = vmul.f32 %v671, %v45
  %v688 = vadd.f32 %v624, %v672
  %v689 = vadd.f32 %v625, %v673
  %v690 = vadd.f32 %v626, %v674
  %v691 = vadd.f32 %v627, %v675
  %v692 = vadd.f32 %v628, %v676
  %v693 = vadd.f32 %v629, %v677
  %v694 = vadd.f32 %v630, %v678
  %v695 = vadd.f32 %v631, %v679
  %v696 = vadd.f32 %v632, %v680
  %v697 = vadd.f32 %v633, %v681
  %v698 = vadd.f32 %v634, %v682
  %v699 = vadd.f32 %v635, %v683
  %v700 = vadd.f32 %v636, %v684
  %v701 = vadd.f32 %v637, %v685
  %v702 = vadd.f32 %v638, %v686
  %v703 = vadd.f32 %v639, %v687
  %v704 = vlaneseq
  %v705 = vshrl.u32 %v704, 7
  %v706 = vsub.s32 7, %v705
  %v707 = vrot.slane %v257, %v706
  %v708 = vlaneseq
  %v709 = vshrl.u32 %v708, 7
  %v710 = vsub.s32 7, %v709
  %v711 = vrot.slane %v259, %v710
  %v712 = vlaneseq
  %v713 = vshrl.u32 %v712, 7
  %v714 = vsub.s32 7, %v713
  %v715 = vrot.slane %v261, %v714
  %v716 = vlaneseq
  %v717 = vshrl.u32 %v716, 7
  %v718 = vsub.s32 7, %v717
  %v719 = vrot.slane %v263, %v718
  %v720 = vlaneseq
  %v721 = vshrl.u32 %v720, 7
  %v722 = vsub.s32 7, %v721
  %v723 = vrot.slane %v265, %v722
  %v724 = vlaneseq
  %v725 = vshrl.u32 %v724, 7
  %v726 = vsub.s32 7, %v725
  %v727 = vrot.slane %v267, %v726
  %v728 = vlaneseq
  %v729 = vshrl.u32 %v728, 7
  %v730 = vsub.s32 7, %v729
  %v731 = vrot.slane %v269, %v730
  %v732 = vlaneseq
  %v733 = vshrl.u32 %v732, 7
  %v734 = vsub.s32 7, %v733
  %v735 = vrot.slane %v271, %v734
  %v736 = vmul.f32 %v707, %v46
  %v737 = vmul.f32 %v707, %v47
  %v738 = vmul.f32 %v711, %v46
  %v739 = vmul.f32 %v711, %v47
  %v740 = vmul.f32 %v715, %v46
  %v741 = vmul.f32 %v715, %v47
  %v742 = vmul.f32 %v719, %v46
  %v743 = vmul.f32 %v719, %v47
  %v744 = vmul.f32 %v723, %v46
  %v745 = vmul.f32 %v723, %v47
  %v746 = vmul.f32 %v727, %v46
  %v747 = vmul.f32 %v727, %v47
  %v748 = vmul.f32 %v731, %v46
  %v749 = vmul.f32 %v731, %v47
  %v750 = vmul.f32 %v735, %v46
  %v751 = vmul.f32 %v735, %v47
  %v752 = vadd.f32 %v688, %v736
  %v753 = vadd.f32 %v689, %v737
  %v754 = vadd.f32 %v690, %v738
  %v755 = vadd.f32 %v691, %v739
  %v756 = vadd.f32 %v692, %v740
  %v757 = vadd.f32 %v693, %v741
  %v758 = vadd.f32 %v694, %v742
  %v759 = vadd.f32 %v695, %v743
  %v760 = vadd.f32 %v696, %v744
  %v761 = vadd.f32 %v697, %v745
  %v762 = vadd.f32 %v698, %v746
  %v763 = vadd.f32 %v699, %v747
  %v764 = vadd.f32 %v700, %v748
  %v765 = vadd.f32 %v701, %v749
  %v766 = vadd.f32 %v702, %v750
  %v767 = vadd.f32 %v703, %v751
  %768 = vst [vmem:[%s3] sm:$0xff] %v752
  %769 = vst [vmem:[%s3 + $0x8] sm:$0xff] %v753
  %770 = vst [vmem:[%s3 + $0x10] sm:$0xff] %v754
  %771 = vst [vmem:[%s3 + $0x18] sm:$0xff] %v755
  %772 = vst [vmem:[%s3 + $0x20] sm:$0xff] %v756
  %773 = vst [vmem:[%s3 + $0x28] sm:$0xff] %v757
  %774 = vst [vmem:[%s3 + $0x30] sm:$0xff] %v758
  %775 = vst [vmem:[%s3 + $0x38] sm:$0xff] %v759
  %776 = vst [vmem:[%s3 + $0x40] sm:$0xff] %v760
  %777 = vst [vmem:[%s3 + $0x48] sm:$0xff] %v761
  %778 = vst [vmem:[%s3 + $0x50] sm:$0xff] %v762
  %779 = vst [vmem:[%s3 + $0x58] sm:$0xff] %v763
  %780 = vst [vmem:[%s3 + $0x60] sm:$0xff] %v764
  %781 = vst [vmem:[%s3 + $0x68] sm:$0xff] %v765
  %782 = vst [vmem:[%s3 + $0x70] sm:$0xff] %v766
  %783 = vst [vmem:[%s3 + $0x78] sm:$0xff] %v767
  // Predicated region
  $region14: #{issa_forward.3} parent=0 // pred_check
    _
  $region15: #{issa_forward.3} parent=0 // pred_check_branch
    %785 = sbr.rel (0) target = $region17
  $region16: #{issa_forward.3} parent=0 // pred_region
    _
  $region17: #{issa_forward.3} parent=0 // pred_fallthru
    _
  // Predicated region
  $region18: #{issa_forward.3} parent=0 // pred_check
    _
  $region19: #{issa_forward.3} parent=0 // pred_check_branch
    %787 = sbr.rel (0) target = $region21
  $region20: #{issa_forward.3} parent=0 // pred_region
    _
  $region21: #{issa_forward.3} parent=0 // pred_fallthru
    _

// kernel: issa_forward.2
$region0: #{issa_forward.2}
  #allocation0 [shape = 'u32[]', space=smem, size = 0x4, offset = 0x4, fixed_abs, tag = 'smem constant byte address 0x4 - core index']
  #allocation1 [shape = 'u32[144,128]{1,0:T(1,128)}', space=vmem, size = 0x12000, scoped, tag = 'internal scratch']
  %s0 = inlined_call_operand.vmem [shape: f32[16,1024], index: 0, kind: input, shape index: {}]
  %s1 = inlined_call_operand.vmem [shape: f32[2,16], index: 1, kind: input, shape index: {}]
  %s2 = inlined_call_operand.vmem [shape: f32[2,16], index: 2, kind: input, shape index: {}]
  %s3 = inlined_call_operand.vmem [shape: f32[16,16], index: 3, kind: input, shape index: {}]
  %s4 = inlined_call_operand.vmem [shape: f32[2,1], index: 4, kind: input, shape index: {}]
  %s5 = inlined_call_operand.vmem [shape: f32[2,1], index: 5, kind: input, shape index: {}]
  %s6 = inlined_call_operand.vmem [shape: f32[16,1], index: 6, kind: input, shape index: {}]
  %s7 = inlined_call_operand.vmem [shape: f32[2,1024], index: 7, kind: output, shape index: {0}]
  %s8 = inlined_call_operand.vmem [shape: f32[2,1024], index: 8, kind: output, shape index: {1}]
  %s9 = inlined_call_operand.vmem [shape: f32[16,1024], index: 9, kind: output, shape index: {2}]
  %10 = xla_tuple %s7, %s8, %s9
  %s11 = sld [smem:[#allocation0]]
  $region119: #{issa_forward.2} parent=0
    _
  %s13 = ssub.s32 1, %s11
  %s14 = scalar_select 0, %s13, %s11
  $region1: #{issa_forward.2} parent=0
    #allocation2 [shape = 'u8[65536]{0}', space=vmem, size = 0x10000, scoped, tag = 'input window, operand 0']
    #allocation3 [shape = 'u8[65536]{0}', space=vmem, size = 0x10000, scoped, tag = 'output window, operand 2']
    loop: start=0, step=1, limit=4
    $region2: #{issa_forward.2} parent=1 // loop_pre_header
      _
    $region3: #{issa_forward.2} parent=1 // loop_header
      %s16 = sphi 0, %s20
      %p17 = scmp.ge.s32.totalorder %s16, 4
      %s26 = sphi 0, %s28
      %s29 = sphi 0, %s26
      %s30 = sphi 0, %s29
      %s46 = sphi 0, %s30
      %s50 = sphi 0, %s50
      %s52 = sphi 0, %s50
      %s53 = sphi 0, %s52
      %s67 = sphi 0, %s53
      %s71 = sphi 0, %s71
      %s73 = sphi 0, %s71
      %s74 = sphi 0, %s73
      %s88 = sphi 0, %s74
      %s92 = sphi 0, %s92
      %s94 = sphi 0, %s92
      %s95 = sphi 0, %s94
      %s109 = sphi 0, %s95
      %s113 = sphi 0, %s113
      %s115 = sphi 0, %s113
      %s116 = sphi 0, %s115
      %s130 = sphi 0, %s116
      %s134 = sphi 0, %s134
      %s136 = sphi 0, %s134
      %s137 = sphi 0, %s136
      %s151 = sphi 0, %s137
      %s155 = sphi 0, %s155
      %s157 = sphi 0, %s155
      %s158 = sphi 0, %s157
      %s172 = sphi 0, %s158
      %s178 = sphi 0, %s180
      %s181 = sphi 0, %s178
      %s182 = sphi 0, %s181
      %s198 = sphi 0, %s182
      %s204 = sphi 0, %s206
      %s207 = sphi 0, %s204
      %s208 = sphi 0, %s207
      %s224 = sphi 0, %s208
      %s230 = sphi 0, %s232
      %s233 = sphi 0, %s230
      %s234 = sphi 0, %s233
      %s250 = sphi 0, %s234
    $region4: #{issa_forward.2} parent=1 // loop_header_branch
      %19 = sbr.rel (%p17) target = $region8
    $region5: #{issa_forward.2} parent=1 // loop_body
      %s21 = ssub.s32 %s16, 1
      %s22 = ssub.s32 %s16, 2
      %s23 = sadd.s32 %s16, 1
      %s24 = ssub.s32 %s16, %s23
      %p25 = scmp.eq.s32.totalorder %s24, 0
      %s27 = sadd.s32 %s26, 1
      %s28 = scalar_select %p25, %s26, %s27
      %p31 = pneg %p25
      %p32 = scmp.eq.s32.totalorder %s16, 1
      %p33 = por %p31, %p32
      %p34 = scmp.ne.s32.totalorder %s26, %s29
      %p35 = scmp.eq.s32.totalorder %s16, 0
      %p36 = por %p34, %p35
      %p37 = scmp.ne.s32.totalorder %s26, %s29
      %p38 = scmp.eq.s32.totalorder %s21, 1
      %p39 = por %p37, %p38
      %p40 = scmp.ne.s32.totalorder %s29, %s30
      %p41 = scmp.eq.s32.totalorder %s21, 0
      %p42 = por %p40, %p41
      %p43 = scmp.ne.s32.totalorder %s29, %s30
      %p44 = scmp.eq.s32.totalorder %s22, 1
      %p45 = por %p43, %p44
      %p47 = scmp.ne.s32.totalorder %s30, %s46
      %p48 = scmp.eq.s32.totalorder %s22, 0
      %p49 = por %p47, %p48
      %s51 = sadd.s32 %s50, 1
      %p54 = scmp.eq.s32.totalorder %s16, 1
      %p55 = scmp.ne.s32.totalorder %s50, %s52
      %p56 = scmp.eq.s32.totalorder %s16, 0
      %p57 = por %p55, %p56
      %p58 = scmp.ne.s32.totalorder %s50, %s52
      %p59 = scmp.eq.s32.totalorder %s21, 1
      %p60 = por %p58, %p59
      %p61 = scmp.ne.s32.totalorder %s52, %s53
      %p62 = scmp.eq.s32.totalorder %s21, 0
      %p63 = por %p61, %p62
      %p64 = scmp.ne.s32.totalorder %s52, %s53
      %p65 = scmp.eq.s32.totalorder %s22, 1
      %p66 = por %p64, %p65
      %p68 = scmp.ne.s32.totalorder %s53, %s67
      %p69 = scmp.eq.s32.totalorder %s22, 0
      %p70 = por %p68, %p69
      %s72 = sadd.s32 %s71, 1
      %p75 = scmp.eq.s32.totalorder %s16, 1
      %p76 = scmp.ne.s32.totalorder %s71, %s73
      %p77 = scmp.eq.s32.totalorder %s16, 0
      %p78 = por %p76, %p77
      %p79 = scmp.ne.s32.totalorder %s71, %s73
      %p80 = scmp.eq.s32.totalorder %s21, 1
      %p81 = por %p79, %p80
      %p82 = scmp.ne.s32.totalorder %s73, %s74
      %p83 = scmp.eq.s32.totalorder %s21, 0
      %p84 = por %p82, %p83
      %p85 = scmp.ne.s32.totalorder %s73, %s74
      %p86 = scmp.eq.s32.totalorder %s22, 1
      %p87 = por %p85, %p86
      %p89 = scmp.ne.s32.totalorder %s74, %s88
      %p90 = scmp.eq.s32.totalorder %s22, 0
      %p91 = por %p89, %p90
      %s93 = sadd.s32 %s92, 1
      %p96 = scmp.eq.s32.totalorder %s16, 1
      %p97 = scmp.ne.s32.totalorder %s92, %s94
      %p98 = scmp.eq.s32.totalorder %s16, 0
      %p99 = por %p97, %p98
      %p100 = scmp.ne.s32.totalorder %s92, %s94
      %p101 = scmp.eq.s32.totalorder %s21, 1
      %p102 = por %p100, %p101
      %p103 = scmp.ne.s32.totalorder %s94, %s95
      %p104 = scmp.eq.s32.totalorder %s21, 0
      %p105 = por %p103, %p104
      %p106 = scmp.ne.s32.totalorder %s94, %s95
      %p107 = scmp.eq.s32.totalorder %s22, 1
      %p108 = por %p106, %p107
      %p110 = scmp.ne.s32.totalorder %s95, %s109
      %p111 = scmp.eq.s32.totalorder %s22, 0
      %p112 = por %p110, %p111
      %s114 = sadd.s32 %s113, 1
      %p117 = scmp.eq.s32.totalorder %s16, 1
      %p118 = scmp.ne.s32.totalorder %s113, %s115
      %p119 = scmp.eq.s32.totalorder %s16, 0
      %p120 = por %p118, %p119
      %p121 = scmp.ne.s32.totalorder %s113, %s115
      %p122 = scmp.eq.s32.totalorder %s21, 1
      %p123 = por %p121, %p122
      %p124 = scmp.ne.s32.totalorder %s115, %s116
      %p125 = scmp.eq.s32.totalorder %s21, 0
      %p126 = por %p124, %p125
      %p127 = scmp.ne.s32.totalorder %s115, %s116
      %p128 = scmp.eq.s32.totalorder %s22, 1
      %p129 = por %p127, %p128
      %p131 = scmp.ne.s32.totalorder %s116, %s130
      %p132 = scmp.eq.s32.totalorder %s22, 0
      %p133 = por %p131, %p132
      %s135 = sadd.s32 %s134, 1
      %p138 = scmp.eq.s32.totalorder %s16, 1
      %p139 = scmp.ne.s32.totalorder %s134, %s136
      %p140 = scmp.eq.s32.totalorder %s16, 0
      %p141 = por %p139, %p140
      %p142 = scmp.ne.s32.totalorder %s134, %s136
      %p143 = scmp.eq.s32.totalorder %s21, 1
      %p144 = por %p142, %p143
      %p145 = scmp.ne.s32.totalorder %s136, %s137
      %p146 = scmp.eq.s32.totalorder %s21, 0
      %p147 = por %p145, %p146
      %p148 = scmp.ne.s32.totalorder %s136, %s137
      %p149 = scmp.eq.s32.totalorder %s22, 1
      %p150 = por %p148, %p149
      %p152 = scmp.ne.s32.totalorder %s137, %s151
      %p153 = scmp.eq.s32.totalorder %s22, 0
      %p154 = por %p152, %p153
      %s156 = sadd.s32 %s155, 1
      %p159 = scmp.eq.s32.totalorder %s16, 1
      %p160 = scmp.ne.s32.totalorder %s155, %s157
      %p161 = scmp.eq.s32.totalorder %s16, 0
      %p162 = por %p160, %p161
      %p163 = scmp.ne.s32.totalorder %s155, %s157
      %p164 = scmp.eq.s32.totalorder %s21, 1
      %p165 = por %p163, %p164
      %p166 = scmp.ne.s32.totalorder %s157, %s158
      %p167 = scmp.eq.s32.totalorder %s21, 0
      %p168 = por %p166, %p167
      %p169 = scmp.ne.s32.totalorder %s157, %s158
      %p170 = scmp.eq.s32.totalorder %s22, 1
      %p171 = por %p169, %p170
      %p173 = scmp.ne.s32.totalorder %s158, %s172
      %p174 = scmp.eq.s32.totalorder %s22, 0
      %p175 = por %p173, %p174
      %s176 = ssub.s32 %s16, %s23
      %p177 = scmp.eq.s32.totalorder %s176, 0
      %s179 = sadd.s32 %s178, 1
      %s180 = scalar_select %p177, %s178, %s179
      %p183 = pneg %p177
      %p184 = scmp.eq.s32.totalorder %s16, 1
      %p185 = por %p183, %p184
      %p186 = scmp.ne.s32.totalorder %s178, %s181
      %p187 = scmp.eq.s32.totalorder %s16, 0
      %p188 = por %p186, %p187
      %p189 = scmp.ne.s32.totalorder %s178, %s181
      %p190 = scmp.eq.s32.totalorder %s21, 1
      %p191 = por %p189, %p190
      %p192 = scmp.ne.s32.totalorder %s181, %s182
      %p193 = scmp.eq.s32.totalorder %s21, 0
      %p194 = por %p192, %p193
      %p195 = scmp.ne.s32.totalorder %s181, %s182
      %p196 = scmp.eq.s32.totalorder %s22, 1
      %p197 = por %p195, %p196
      %p199 = scmp.ne.s32.totalorder %s182, %s198
      %p200 = scmp.eq.s32.totalorder %s22, 0
      %p201 = por %p199, %p200
      %s202 = ssub.s32 %s16, %s23
      %p203 = scmp.eq.s32.totalorder %s202, 0
      %s205 = sadd.s32 %s204, 1
      %s206 = scalar_select %p203, %s204, %s205
      %p209 = pneg %p203
      %p210 = scmp.eq.s32.totalorder %s16, 1
      %p211 = por %p209, %p210
      %p212 = scmp.ne.s32.totalorder %s204, %s207
      %p213 = scmp.eq.s32.totalorder %s16, 0
      %p214 = por %p212, %p213
      %p215 = scmp.ne.s32.totalorder %s204, %s207
      %p216 = scmp.eq.s32.totalorder %s21, 1
      %p217 = por %p215, %p216
      %p218 = scmp.ne.s32.totalorder %s207, %s208
      %p219 = scmp.eq.s32.totalorder %s21, 0
      %p220 = por %p218, %p219
      %p221 = scmp.ne.s32.totalorder %s207, %s208
      %p222 = scmp.eq.s32.totalorder %s22, 1
      %p223 = por %p221, %p222
      %p225 = scmp.ne.s32.totalorder %s208, %s224
      %p226 = scmp.eq.s32.totalorder %s22, 0
      %p227 = por %p225, %p226
      %s228 = ssub.s32 %s16, %s23
      %p229 = scmp.eq.s32.totalorder %s228, 0
      %s231 = sadd.s32 %s230, 1
      %s232 = scalar_select %p229, %s230, %s231
      %p235 = pneg %p229
      %p236 = scmp.eq.s32.totalorder %s16, 1
      %p237 = por %p235, %p236
      %p238 = scmp.ne.s32.totalorder %s230, %s233
      %p239 = scmp.eq.s32.totalorder %s16, 0
      %p240 = por %p238, %p239
      %p241 = scmp.ne.s32.totalorder %s230, %s233
      %p242 = scmp.eq.s32.totalorder %s21, 1
      %p243 = por %p241, %p242
      %p244 = scmp.ne.s32.totalorder %s233, %s234
      %p245 = scmp.eq.s32.totalorder %s21, 0
      %p246 = por %p244, %p245
      %p247 = scmp.ne.s32.totalorder %s233, %s234
      %p248 = scmp.eq.s32.totalorder %s22, 1
      %p249 = por %p247, %p248
      %p251 = scmp.ne.s32.totalorder %s234, %s250
      %p252 = scmp.eq.s32.totalorder %s22, 0
      %p253 = por %p251, %p252
      %p254 = scmp.le.s32.totalorder 1, %s16
      %p255 = scmp.lt.s32.totalorder %s16, 3
      %p256 = pnand %p254, %p255
      %p257 = pneg %p256
      // Predicated region
      $region9: #{issa_forward.2} parent=5 // pred_check
        _
      $region10: #{issa_forward.2} parent=5 // pred_check_branch
        %259 = sbr.rel (%p256) target = $region12
      $region11: #{issa_forward.2} parent=5 // pred_region
        %s260 = ssub.s32 %s16, 1
        // Predicated region
        $region13: #{issa_forward.2} parent=11 // pred_check
          %p261 = pneg %p63
        $region14: #{issa_forward.2} parent=11 // pred_check_branch
          %263 = sbr.rel (%p261) target = $region16
        $region15: #{issa_forward.2} parent=11 // pred_region
          _
        $region16: #{issa_forward.2} parent=11 // pred_fallthru
          _
        // Predicated region
        $region17: #{issa_forward.2} parent=11 // pred_check
          %p264 = pneg %p84
        $region18: #{issa_forward.2} parent=11 // pred_check_branch
          %266 = sbr.rel (%p264) target = $region20
        $region19: #{issa_forward.2} parent=11 // pred_region
          _
        $region20: #{issa_forward.2} parent=11 // pred_fallthru
          _
        // Predicated region
        $region21: #{issa_forward.2} parent=11 // pred_check
          %p267 = pneg %p105
        $region22: #{issa_forward.2} parent=11 // pred_check_branch
          %269 = sbr.rel (%p267) target = $region24
        $region23: #{issa_forward.2} parent=11 // pred_region
          _
        $region24: #{issa_forward.2} parent=11 // pred_fallthru
          _
        // Predicated region
        $region25: #{issa_forward.2} parent=11 // pred_check
          %p270 = pneg %p126
        $region26: #{issa_forward.2} parent=11 // pred_check_branch
          %272 = sbr.rel (%p270) target = $region28
        $region27: #{issa_forward.2} parent=11 // pred_region
          _
        $region28: #{issa_forward.2} parent=11 // pred_fallthru
          _
        // Predicated region
        $region29: #{issa_forward.2} parent=11 // pred_check
          %p273 = pneg %p147
        $region30: #{issa_forward.2} parent=11 // pred_check_branch
          %275 = sbr.rel (%p273) target = $region32
        $region31: #{issa_forward.2} parent=11 // pred_region
          _
        $region32: #{issa_forward.2} parent=11 // pred_fallthru
          _
        // Predicated region
        $region33: #{issa_forward.2} parent=11 // pred_check
          %p276 = pneg %p168
        $region34: #{issa_forward.2} parent=11 // pred_check_branch
          %278 = sbr.rel (%p276) target = $region36
        $region35: #{issa_forward.2} parent=11 // pred_region
          _
        $region36: #{issa_forward.2} parent=11 // pred_fallthru
          _
      $region12: #{issa_forward.2} parent=5 // pred_fallthru
        _
      %p279 = scmp.lt.s32.totalorder %s16, 2
      // Predicated region
      $region37: #{issa_forward.2} parent=5 // pred_check
        %p280 = pneg %p279
      $region38: #{issa_forward.2} parent=5 // pred_check_branch
        %282 = sbr.rel (%p280) target = $region40
      $region39: #{issa_forward.2} parent=5 // pred_region
        // Predicated region
        $region41: #{issa_forward.2} parent=39 // pred_check
          %p283 = pneg %p36
        $region42: #{issa_forward.2} parent=39 // pred_check_branch
          %285 = sbr.rel (%p283) target = $region44
        $region43: #{issa_forward.2} parent=39 // pred_region
          %s286 = sand.u32 %s26, 1
          %s287 = sand.u32 %s26, 1
          %s288 = smul.addr %s287, 64
          %s289 = scalar_lea.vmem [#allocation2], %s288
          %s290 = smul.u32 4, %s16
          %s291 = smul.addr %s290, 8
          %s292 = scalar_lea.vmem %s0, %s291
          // Predicated region
          $region45: #{issa_forward.2} parent=43 // pred_check
            _
          $region46: #{issa_forward.2} parent=43 // pred_check_branch
            %294 = sbr.rel (0) target = $region48
          $region47: #{issa_forward.2} parent=43 // pred_region
            // Predicated region
            $region49: #{issa_forward.2} parent=47 // pred_check
              _
            $region50: #{issa_forward.2} parent=47 // pred_check_branch
              %296 = sbr.rel (0) target = $region52
            $region51: #{issa_forward.2} parent=47 // pred_region
              loop: start=0, step=1, limit=1
              $region53: #{issa_forward.2} parent=51 // loop_pre_header
                _
              $region54: #{issa_forward.2} parent=51 // loop_header
                %s298 = sphi 0, %s302
                %p299 = scmp.ge.s32.totalorder %s298, 1
                %s303 = sphi %s292, %s292
                %s304 = sphi %s289, %s289
              $region55: #{issa_forward.2} parent=51 // loop_header_branch
                %301 = sbr.rel (%p299) target = $region59
              $region56: #{issa_forward.2} parent=51 // loop_body
                %v305 = vld [vmem:[%s303] sm:$0xff]
                %306 = vst [vmem:[%s304] sm:$0xff] %v305
                %v307 = vld [vmem:[%s303 + $0x8] sm:$0xff]
                %308 = vst [vmem:[%s304 + $0x8] sm:$0xff] %v307
                %v309 = vld [vmem:[%s303 + $0x10] sm:$0xff]
                %310 = vst [vmem:[%s304 + $0x10] sm:$0xff] %v309
                %v311 = vld [vmem:[%s303 + $0x18] sm:$0xff]
                %312 = vst [vmem:[%s304 + $0x18] sm:$0xff] %v311
                %v313 = vld [vmem:[%s303 + $0x40] sm:$0xff]
                %314 = vst [vmem:[%s304 + $0x20] sm:$0xff] %v313
                %v315 = vld [vmem:[%s303 + $0x48] sm:$0xff]
                %316 = vst [vmem:[%s304 + $0x28] sm:$0xff] %v315
                %v317 = vld [vmem:[%s303 + $0x50] sm:$0xff]
                %318 = vst [vmem:[%s304 + $0x30] sm:$0xff] %v317
                %v319 = vld [vmem:[%s303 + $0x58] sm:$0xff]
                %320 = vst [vmem:[%s304 + $0x38] sm:$0xff] %v319
              $region57: #{issa_forward.2} parent=51 // loop_footer
                %s302 = sadd.s32 1, %s298
              $region58: #{issa_forward.2} parent=51 // loop_footer_branch
                %297 = sbr.rel target = $region54
              $region59: #{issa_forward.2} parent=51 // loop_exit
                _
            $region52: #{issa_forward.2} parent=47 // pred_fallthru
              _
            // Predicated region
            $region60: #{issa_forward.2} parent=47 // pred_check
              _
            $region61: #{issa_forward.2} parent=47 // pred_check_branch
              %322 = sbr.rel target = $region63
            $region62: #{issa_forward.2} parent=47 // pred_region
              _
            $region63: #{issa_forward.2} parent=47 // pred_fallthru
              _
          $region48: #{issa_forward.2} parent=43 // pred_fallthru
            _
          %323 = vnop
        $region44: #{issa_forward.2} parent=39 // pred_fallthru
          _
      $region40: #{issa_forward.2} parent=5 // pred_fallthru
        _
      %p324 = scmp.le.s32.totalorder 1, %s16
      %p325 = scmp.lt.s32.totalorder %s16, 3
      %p326 = pnand %p324, %p325
      %p327 = pneg %p326
      // Predicated region
      $region64: #{issa_forward.2} parent=5 // pred_check
        _
      $region65: #{issa_forward.2} parent=5 // pred_check_branch
        %329 = sbr.rel (%p326) target = $region67
      $region66: #{issa_forward.2} parent=5 // pred_region
        %s330 = ssub.s32 %s16, 1
        %s331 = sand.u32 %s29, 1
        %s332 = sand.u32 %s29, 1
        %s333 = smul.addr %s332, 64
        %s334 = scalar_lea.vmem [#allocation2], %s333
        // Predicated region
        $region68: #{issa_forward.2} parent=66 // pred_check
          %p335 = pneg %p42
        $region69: #{issa_forward.2} parent=66 // pred_check_branch
          %337 = sbr.rel (%p335) target = $region71
        $region70: #{issa_forward.2} parent=66 // pred_region
          _
        $region71: #{issa_forward.2} parent=66 // pred_fallthru
          _
        %s338 = sand.u32 %s29, 1
        %s339 = sand.u32 %s29, 1
        %s340 = smul.addr %s339, 64
        %s341 = scalar_lea.vmem [#allocation2], %s340
        %p342 = pneg %p42
        %p343 = pneg %p39
        %p344 = pneg %p63
        %p345 = pneg %p60
        %p346 = pneg %p84
        %p347 = pneg %p81
        %p348 = pneg %p105
        %p349 = pneg %p102
        %p350 = pneg %p126
        %p351 = pneg %p123
        %p352 = pneg %p147
        %p353 = pneg %p144
        %p354 = pneg %p168
        %p355 = pneg %p165
        %p356 = pneg %p194
        %p357 = pneg %p191
        %s358 = smul.u32 4, %s21
        %p359 = scmp.lt.s32.totalorder %s358, 7
        %s360 = scalar_select %p359, %s358, 7
        %s361 = smul.addr %s360, 2
        %s362 = scalar_lea.vmem %s7, %s361
        %p363 = pneg %p220
        %p364 = pneg %p217
        %s365 = smul.u32 4, %s21
        %p366 = scmp.lt.s32.totalorder %s365, 7
        %s367 = scalar_select %p366, %s365, 7
        %s368 = smul.addr %s367, 2
        %s369 = scalar_lea.vmem %s8, %s368
        %p370 = pneg %p246
        %p371 = pneg %p243
        %s372 = sand.u32 %s233, 1
        %s373 = sand.u32 %s233, 1
        %s374 = smul.addr %s373, 64
        %s375 = scalar_lea.vmem [#allocation3], %s374
        %s376 = smul.u32 4, %s21
        %s377 = smul.u32 4, %s21
        %p378 = scmp.lt.s32.totalorder %s377, 7
        %s379 = scalar_select %p378, %s377, 7
        %s380 = smul.addr %s379, 2
        %s381 = scalar_lea.vmem %s7, %s380
        %s382 = smul.u32 4, %s21
        %s383 = smul.u32 4, %s21
        %p384 = scmp.lt.s32.totalorder %s383, 7
        %s385 = scalar_select %p384, %s383, 7
        %s386 = smul.addr %s385, 2
        %s387 = scalar_lea.vmem %s8, %s386
        %s388 = smul.u32 4, %s21
        %s389 = smul.u32 4, %s21
        %v390 = vld [vmem:[%s334] sm:$0xff]
        %v391 = vld [vmem:[%s334 + $0x8] sm:$0xff]
        %v392 = vld [vmem:[%s334 + $0x10] sm:$0xff]
        %v393 = vld [vmem:[%s334 + $0x18] sm:$0xff]
        %v394 = vld [vmem:[%s334 + $0x20] sm:$0xff]
        %v395 = vld [vmem:[%s334 + $0x28] sm:$0xff]
        %v396 = vld [vmem:[%s334 + $0x30] sm:$0xff]
        %v397 = vld [vmem:[%s334 + $0x38] sm:$0xff]
        %v398 = vld [vmem:[%s1] sm:$0x3]
        %v399 = vld [vmem:[%s4] sm:$0x3]
        %401 = vset.pattern.permute.xlu0 0
        %402 = vperm.xlu0 %401, %v399
        %v403 = vpop.permute.xlu0 %402
        %vm405 = vcmask 130048
        %v407 = vsel %vm405, %v398, 0
        %409 = vmatprep.subr.mxu0 0.0
        %410 = vmatpush1.msra.mxu0 0.0
        %411 = vmatprep.subr.mxu0 0.0
        %412 = vmatpush1.msra.mxu0 0.0
        %413 = vmatprep.subr.mxu0 0.0
        %414 = vmatpush1.msra.mxu0 0.0
        %415 = vmatprep.subr.mxu0 0.0
        %416 = vmatpush1.msra.mxu0 0.0
        %417 = vmatprep.subr.mxu0 0.0
        %418 = vmatpush1.msra.mxu0 0.0
        %419 = vmatprep.subr.mxu0 0.0
        %420 = vmatpush1.msra.mxu0 0.0
        %421 = vmatprep.subr.mxu0 0.0
        %422 = vmatpush1.msra.mxu0 0.0
        %423 = vmatprep.subr.mxu0 0.0
        %424 = vmatpush1.msra.mxu0 0.0
        %425 = vmatprep.subr.mxu0 0.0
        %426 = vmatpush1.msra.mxu0 0.0
        %427 = vmatprep.subr.mxu0 0.0
        %428 = vmatpush1.msra.mxu0 0.0
        %429 = vmatprep.subr.mxu0 0.0
        %430 = vmatpush1.msra.mxu0 0.0
        %431 = vmatprep.subr.mxu0 0.0
        %432 = vmatpush1.msra.mxu0 0.0
        %433 = vmatprep.subr.mxu0 0.0
        %434 = vmatpush1.msra.mxu0 0.0
        %435 = vmatprep.subr.mxu0 0.0
        %436 = vmatpush1.msra.mxu0 0.0
        %437 = vmatprep.subr.mxu0 %v395
        %438 = vmatpush1.msra.mxu0 %v394
        %439 = vmatprep.subr.mxu0 %v391
        %440 = vmatpush1.msra.mxu0 %v390
        %441 = vmatprep.subr.mxu0 0.0
        %442 = vmatpush2.msra.mxu0 0.0
        %443 = vmatprep.subr.mxu0 0.0
        %444 = vmatpush2.msra.mxu0 0.0
        %445 = vmatprep.subr.mxu0 0.0
        %446 = vmatpush2.msra.mxu0 0.0
        %447 = vmatprep.subr.mxu0 0.0
        %448 = vmatpush2.msra.mxu0 0.0
        %449 = vmatprep.subr.mxu0 0.0
        %450 = vmatpush2.msra.mxu0 0.0
        %451 = vmatprep.subr.mxu0 0.0
        %452 = vmatpush2.msra.mxu0 0.0
        %453 = vmatprep.subr.mxu0 0.0
        %454 = vmatpush2.msra.mxu0 0.0
        %455 = vmatprep.subr.mxu0 0.0
        %456 = vmatpush2.msra.mxu0 0.0
        %457 = vmatprep.subr.mxu0 0.0
        %458 = vmatpush2.msra.mxu0 0.0
        %459 = vmatprep.subr.mxu0 0.0
        %460 = vmatpush2.msra.mxu0 0.0
        %461 = vmatprep.subr.mxu0 0.0
        %462 = vmatpush2.msra.mxu0 0.0
        %463 = vmatprep.subr.mxu0 0.0
        %464 = vmatpush2.msra.mxu0 0.0
        %465 = vmatprep.subr.mxu0 0.0
        %466 = vmatpush2.msra.mxu0 0.0
        %467 = vmatprep.subr.mxu0 0.0
        %468 = vmatpush2.msra.mxu0 0.0
        %469 = vmatprep.subr.mxu0 0.0
        %470 = vmatpush2.msra.mxu0 0.0
        %471 = vmatprep.subr.mxu0 0.0
        %472 = vmatpush2.msra.mxu0 0.0
        %473 = vmatprep.mubr.f32.mxu0 0.0
        %474 = vmatmul.mubr.f32.gmra.mxu0 %v407
        %v475 = vpop.f32.mrf.mxu0
        %v476 = vadd.f32 %v403, %v475
        %v477 = vpop.f32.mrf.mxu0
        %v478 = vadd.f32 %v403, %v477
        %479 = vdwg.mxu0
        %480 = vmatprep.subr.mxu0 0.0
        %481 = vmatpush1.msra.mxu0 0.0
        %482 = vmatprep.subr.mxu0 0.0
        %483 = vmatpush1.msra.mxu0 0.0
        %484 = vmatprep.subr.mxu0 0.0
        %485 = vmatpush1.msra.mxu0 0.0
        %486 = vmatprep.subr.mxu0 0.0
        %487 = vmatpush1.msra.mxu0 0.0
        %488 = vmatprep.subr.mxu0 0.0
        %489 = vmatpush1.msra.mxu0 0.0
        %490 = vmatprep.subr.mxu0 0.0
        %491 = vmatpush1.msra.mxu0 0.0
        %492 = vmatprep.subr.mxu0 0.0
        %493 = vmatpush1.msra.mxu0 0.0
        %494 = vmatprep.subr.mxu0 0.0
        %495 = vmatpush1.msra.mxu0 0.0
        %496 = vmatprep.subr.mxu0 0.0
        %497 = vmatpush1.msra.mxu0 0.0
        %498 = vmatprep.subr.mxu0 0.0
        %499 = vmatpush1.msra.mxu0 0.0
        %500 = vmatprep.subr.mxu0 0.0
        %501 = vmatpush1.msra.mxu0 0.0
        %502 = vmatprep.subr.mxu0 0.0
        %503 = vmatpush1.msra.mxu0 0.0
        %504 = vmatprep.subr.mxu0 0.0
        %505 = vmatpush1.msra.mxu0 0.0
        %506 = vmatprep.subr.mxu0 0.0
        %507 = vmatpush1.msra.mxu0 0.0
        %508 = vmatprep.subr.mxu0 %v397
        %509 = vmatpush1.msra.mxu0 %v396
        %510 = vmatprep.subr.mxu0 %v393
        %511 = vmatpush1.msra.mxu0 %v392
        %512 = vmatprep.subr.mxu0 0.0
        %513 = vmatpush2.msra.mxu0 0.0
        %514 = vmatprep.subr.mxu0 0.0
        %515 = vmatpush2.msra.mxu0 0.0
        %516 = vmatprep.subr.mxu0 0.0
        %517 = vmatpush2.msra.mxu0 0.0
        %518 = vmatprep.subr.mxu0 0.0
        %519 = vmatpush2.msra.mxu0 0.0
        %520 = vmatprep.subr.mxu0 0.0
        %521 = vmatpush2.msra.mxu0 0.0
        %522 = vmatprep.subr.mxu0 0.0
        %523 = vmatpush2.msra.mxu0 0.0
        %524 = vmatprep.subr.mxu0 0.0
        %525 = vmatpush2.msra.mxu0 0.0
        %526 = vmatprep.subr.mxu0 0.0
        %527 = vmatpush2.msra.mxu0 0.0
        %528 = vmatprep.subr.mxu0 0.0
        %529 = vmatpush2.msra.mxu0 0.0
        %530 = vmatprep.subr.mxu0 0.0
        %531 = vmatpush2.msra.mxu0 0.0
        %532 = vmatprep.subr.mxu0 0.0
        %533 = vmatpush2.msra.mxu0 0.0
        %534 = vmatprep.subr.mxu0 0.0
        %535 = vmatpush2.msra.mxu0 0.0
        %536 = vmatprep.subr.mxu0 0.0
        %537 = vmatpush2.msra.mxu0 0.0
        %538 = vmatprep.subr.mxu0 0.0
        %539 = vmatpush2.msra.mxu0 0.0
        %540 = vmatprep.subr.mxu0 0.0
        %541 = vmatpush2.msra.mxu0 0.0
        %542 = vmatprep.subr.mxu0 0.0
        %543 = vmatpush2.msra.mxu0 0.0
        %544 = vmatprep.mubr.f32.mxu0 0.0
        %545 = vmatmul.mubr.f32.gmra.mxu0 %v407
        %v546 = vpop.f32.mrf.mxu0
        %v547 = vadd.f32 %v403, %v546
        %v548 = vpop.f32.mrf.mxu0
        %v549 = vadd.f32 %v403, %v548
        %550 = vdwg.mxu0
        %v551 = vld [vmem:[%s2] sm:$0x3]
        %v552 = vld [vmem:[%s5] sm:$0x3]
        %554 = vset.pattern.permute.xlu0 0
        %555 = vperm.xlu0 %554, %v552
        %v556 = vpop.permute.xlu0 %555
        %v559 = vsel %vm405, %v551, 0
        %561 = vmatprep.subr.mxu0 0.0
        %562 = vmatpush1.msra.mxu0 0.0
        %563 = vmatprep.subr.mxu0 0.0
        %564 = vmatpush1.msra.mxu0 0.0
        %565 = vmatprep.subr.mxu0 0.0
        %566 = vmatpush1.msra.mxu0 0.0
        %567 = vmatprep.subr.mxu0 0.0
        %568 = vmatpush1.msra.mxu0 0.0
        %569 = vmatprep.subr.mxu0 0.0
        %570 = vmatpush1.msra.mxu0 0.0
        %571 = vmatprep.subr.mxu0 0.0
        %572 = vmatpush1.msra.mxu0 0.0
        %573 = vmatprep.subr.mxu0 0.0
        %574 = vmatpush1.msra.mxu0 0.0
        %575 = vmatprep.subr.mxu0 0.0
        %576 = vmatpush1.msra.mxu0 0.0
        %577 = vmatprep.subr.mxu0 0.0
        %578 = vmatpush1.msra.mxu0 0.0
        %579 = vmatprep.subr.mxu0 0.0
        %580 = vmatpush1.msra.mxu0 0.0
        %581 = vmatprep.subr.mxu0 0.0
        %582 = vmatpush1.msra.mxu0 0.0
        %583 = vmatprep.subr.mxu0 0.0
        %584 = vmatpush1.msra.mxu0 0.0
        %585 = vmatprep.subr.mxu0 0.0
        %586 = vmatpush1.msra.mxu0 0.0
        %587 = vmatprep.subr.mxu0 0.0
        %588 = vmatpush1.msra.mxu0 0.0
        %589 = vmatprep.subr.mxu0 %v395
        %590 = vmatpush1.msra.mxu0 %v394
        %591 = vmatprep.subr.mxu0 %v391
        %592 = vmatpush1.msra.mxu0 %v390
        %593 = vmatprep.subr.mxu0 0.0
        %594 = vmatpush2.msra.mxu0 0.0
        %595 = vmatprep.subr.mxu0 0.0
        %596 = vmatpush2.msra.mxu0 0.0
        %597 = vmatprep.subr.mxu0 0.0
        %598 = vmatpush2.msra.mxu0 0.0
        %599 = vmatprep.subr.mxu0 0.0
        %600 = vmatpush2.msra.mxu0 0.0
        %601 = vmatprep.subr.mxu0 0.0
        %602 = vmatpush2.msra.mxu0 0.0
        %603 = vmatprep.subr.mxu0 0.0
        %604 = vmatpush2.msra.mxu0 0.0
        %605 = vmatprep.subr.mxu0 0.0
        %606 = vmatpush2.msra.mxu0 0.0
        %607 = vmatprep.subr.mxu0 0.0
        %608 = vmatpush2.msra.mxu0 0.0
        %609 = vmatprep.subr.mxu0 0.0
        %610 = vmatpush2.msra.mxu0 0.0
        %611 = vmatprep.subr.mxu0 0.0
        %612 = vmatpush2.msra.mxu0 0.0
        %613 = vmatprep.subr.mxu0 0.0
        %614 = vmatpush2.msra.mxu0 0.0
        %615 = vmatprep.subr.mxu0 0.0
        %616 = vmatpush2.msra.mxu0 0.0
        %617 = vmatprep.subr.mxu0 0.0
        %618 = vmatpush2.msra.mxu0 0.0
        %619 = vmatprep.subr.mxu0 0.0
        %620 = vmatpush2.msra.mxu0 0.0
        %621 = vmatprep.subr.mxu0 0.0
        %622 = vmatpush2.msra.mxu0 0.0
        %623 = vmatprep.subr.mxu0 0.0
        %624 = vmatpush2.msra.mxu0 0.0
        %625 = vmatprep.mubr.f32.mxu0 0.0
        %626 = vmatmul.mubr.f32.gmra.mxu0 %v559
        %v627 = vpop.f32.mrf.mxu0
        %v628 = vadd.f32 %v556, %v627
        %v629 = vpop.f32.mrf.mxu0
        %v630 = vadd.f32 %v556, %v629
        %631 = vdwg.mxu0
        %632 = vmatprep.subr.mxu0 0.0
        %633 = vmatpush1.msra.mxu0 0.0
        %634 = vmatprep.subr.mxu0 0.0
        %635 = vmatpush1.msra.mxu0 0.0
        %636 = vmatprep.subr.mxu0 0.0
        %637 = vmatpush1.msra.mxu0 0.0
        %638 = vmatprep.subr.mxu0 0.0
        %639 = vmatpush1.msra.mxu0 0.0
        %640 = vmatprep.subr.mxu0 0.0
        %641 = vmatpush1.msra.mxu0 0.0
        %642 = vmatprep.subr.mxu0 0.0
        %643 = vmatpush1.msra.mxu0 0.0
        %644 = vmatprep.subr.mxu0 0.0
        %645 = vmatpush1.msra.mxu0 0.0
        %646 = vmatprep.subr.mxu0 0.0
        %647 = vmatpush1.msra.mxu0 0.0
        %648 = vmatprep.subr.mxu0 0.0
        %649 = vmatpush1.msra.mxu0 0.0
        %650 = vmatprep.subr.mxu0 0.0
        %651 = vmatpush1.msra.mxu0 0.0
        %652 = vmatprep.subr.mxu0 0.0
        %653 = vmatpush1.msra.mxu0 0.0
        %654 = vmatprep.subr.mxu0 0.0
        %655 = vmatpush1.msra.mxu0 0.0
        %656 = vmatprep.subr.mxu0 0.0
        %657 = vmatpush1.msra.mxu0 0.0
        %658 = vmatprep.subr.mxu0 0.0
        %659 = vmatpush1.msra.mxu0 0.0
        %660 = vmatprep.subr.mxu0 %v397
        %661 = vmatpush1.msra.mxu0 %v396
        %662 = vmatprep.subr.mxu0 %v393
        %663 = vmatpush1.msra.mxu0 %v392
        %664 = vmatprep.subr.mxu0 0.0
        %665 = vmatpush2.msra.mxu0 0.0
        %666 = vmatprep.subr.mxu0 0.0
        %667 = vmatpush2.msra.mxu0 0.0
        %668 = vmatprep.subr.mxu0 0.0
        %669 = vmatpush2.msra.mxu0 0.0
        %670 = vmatprep.subr.mxu0 0.0
        %671 = vmatpush2.msra.mxu0 0.0
        %672 = vmatprep.subr.mxu0 0.0
        %673 = vmatpush2.msra.mxu0 0.0
        %674 = vmatprep.subr.mxu0 0.0
        %675 = vmatpush2.msra.mxu0 0.0
        %676 = vmatprep.subr.mxu0 0.0
        %677 = vmatpush2.msra.mxu0 0.0
        %678 = vmatprep.subr.mxu0 0.0
        %679 = vmatpush2.msra.mxu0 0.0
        %680 = vmatprep.subr.mxu0 0.0
        %681 = vmatpush2.msra.mxu0 0.0
        %682 = vmatprep.subr.mxu0 0.0
        %683 = vmatpush2.msra.mxu0 0.0
        %684 = vmatprep.subr.mxu0 0.0
        %685 = vmatpush2.msra.mxu0 0.0
        %686 = vmatprep.subr.mxu0 0.0
        %687 = vmatpush2.msra.mxu0 0.0
        %688 = vmatprep.subr.mxu0 0.0
        %689 = vmatpush2.msra.mxu0 0.0
        %690 = vmatprep.subr.mxu0 0.0
        %691 = vmatpush2.msra.mxu0 0.0
        %692 = vmatprep.subr.mxu0 0.0
        %693 = vmatpush2.msra.mxu0 0.0
        %694 = vmatprep.subr.mxu0 0.0
        %695 = vmatpush2.msra.mxu0 0.0
        %696 = vmatprep.mubr.f32.mxu0 0.0
        %697 = vmatmul.mubr.f32.gmra.mxu0 %v559
        %v698 = vpop.f32.mrf.mxu0
        %v699 = vadd.f32 %v556, %v698
        %v700 = vpop.f32.mrf.mxu0
        %v701 = vadd.f32 %v556, %v700
        %702 = vdwg.mxu0
        %v703 = vld [vmem:[%s3] sm:$0xff]
        %v704 = vld [vmem:[%s3 + $0x8] sm:$0xff]
        %v705 = vld [vmem:[%s6] sm:$0xff]
        %v706 = vld [vmem:[%s6 + $0x8] sm:$0xff]
        %708 = vset.pattern.permute.xlu0 0
        %709 = vperm.xlu0 %708, %v705
        %v710 = vpop.permute.xlu0 %709
        %713 = vset.pattern.permute.xlu0 0
        %714 = vperm.xlu0 %713, %v706
        %v715 = vpop.permute.xlu0 %714
        %v718 = vsel %vm405, %v703, 0
        %v721 = vsel %vm405, %v704, 0
        %723 = vmatprep.subr.mxu0 0.0
        %724 = vmatpush1.msra.mxu0 0.0
        %725 = vmatprep.subr.mxu0 0.0
        %726 = vmatpush1.msra.mxu0 0.0
        %727 = vmatprep.subr.mxu0 0.0
        %728 = vmatpush1.msra.mxu0 0.0
        %729 = vmatprep.subr.mxu0 0.0
        %730 = vmatpush1.msra.mxu0 0.0
        %731 = vmatprep.subr.mxu0 0.0
        %732 = vmatpush1.msra.mxu0 0.0
        %733 = vmatprep.subr.mxu0 0.0
        %734 = vmatpush1.msra.mxu0 0.0
        %735 = vmatprep.subr.mxu0 0.0
        %736 = vmatpush1.msra.mxu0 0.0
        %737 = vmatprep.subr.mxu0 0.0
        %738 = vmatpush1.msra.mxu0 0.0
        %739 = vmatprep.subr.mxu0 0.0
        %740 = vmatpush1.msra.mxu0 0.0
        %741 = vmatprep.subr.mxu0 0.0
        %742 = vmatpush1.msra.mxu0 0.0
        %743 = vmatprep.subr.mxu0 0.0
        %744 = vmatpush1.msra.mxu0 0.0
        %745 = vmatprep.subr.mxu0 0.0
        %746 = vmatpush1.msra.mxu0 0.0
        %747 = vmatprep.subr.mxu0 0.0
        %748 = vmatpush1.msra.mxu0 0.0
        %749 = vmatprep.subr.mxu0 0.0
        %750 = vmatpush1.msra.mxu0 0.0
        %751 = vmatprep.subr.mxu0 %v395
        %752 = vmatpush1.msra.mxu0 %v394
        %753 = vmatprep.subr.mxu0 %v391
        %754 = vmatpush1.msra.mxu0 %v390
        %755 = vmatprep.subr.mxu0 0.0
        %756 = vmatpush2.msra.mxu0 0.0
        %757 = vmatprep.subr.mxu0 0.0
        %758 = vmatpush2.msra.mxu0 0.0
        %759 = vmatprep.subr.mxu0 0.0
        %760 = vmatpush2.msra.mxu0 0.0
        %761 = vmatprep.subr.mxu0 0.0
        %762 = vmatpush2.msra.mxu0 0.0
        %763 = vmatprep.subr.mxu0 0.0
        %764 = vmatpush2.msra.mxu0 0.0
        %765 = vmatprep.subr.mxu0 0.0
        %766 = vmatpush2.msra.mxu0 0.0
        %767 = vmatprep.subr.mxu0 0.0
        %768 = vmatpush2.msra.mxu0 0.0
        %769 = vmatprep.subr.mxu0 0.0
        %770 = vmatpush2.msra.mxu0 0.0
        %771 = vmatprep.subr.mxu0 0.0
        %772 = vmatpush2.msra.mxu0 0.0
        %773 = vmatprep.subr.mxu0 0.0
        %774 = vmatpush2.msra.mxu0 0.0
        %775 = vmatprep.subr.mxu0 0.0
        %776 = vmatpush2.msra.mxu0 0.0
        %777 = vmatprep.subr.mxu0 0.0
        %778 = vmatpush2.msra.mxu0 0.0
        %779 = vmatprep.subr.mxu0 0.0
        %780 = vmatpush2.msra.mxu0 0.0
        %781 = vmatprep.subr.mxu0 0.0
        %782 = vmatpush2.msra.mxu0 0.0
        %783 = vmatprep.subr.mxu0 0.0
        %784 = vmatpush2.msra.mxu0 0.0
        %785 = vmatprep.subr.mxu0 0.0
        %786 = vmatpush2.msra.mxu0 0.0
        %787 = vmatprep.mubr.f32.mxu0 0.0
        %788 = vmatmul.mubr.f32.gmra.mxu0 %v718
        %v789 = vpop.f32.mrf.mxu0
        %v790 = vadd.f32 %v710, %v789
        %v791 = vpop.f32.mrf.mxu0
        %v792 = vadd.f32 %v710, %v791
        %793 = vmatprep.mubr.f32.mxu0 0.0
        %794 = vmatmul.mubr.f32.gmra.mxu0 %v721
        %v795 = vpop.f32.mrf.mxu0
        %v796 = vadd.f32 %v715, %v795
        %v797 = vpop.f32.mrf.mxu0
        %v798 = vadd.f32 %v715, %v797
        %799 = vdwg.mxu0
        %800 = vmatprep.subr.mxu0 0.0
        %801 = vmatpush1.msra.mxu0 0.0
        %802 = vmatprep.subr.mxu0 0.0
        %803 = vmatpush1.msra.mxu0 0.0
        %804 = vmatprep.subr.mxu0 0.0
        %805 = vmatpush1.msra.mxu0 0.0
        %806 = vmatprep.subr.mxu0 0.0
        %807 = vmatpush1.msra.mxu0 0.0
        %808 = vmatprep.subr.mxu0 0.0
        %809 = vmatpush1.msra.mxu0 0.0
        %810 = vmatprep.subr.mxu0 0.0
        %811 = vmatpush1.msra.mxu0 0.0
        %812 = vmatprep.subr.mxu0 0.0
        %813 = vmatpush1.msra.mxu0 0.0
        %814 = vmatprep.subr.mxu0 0.0
        %815 = vmatpush1.msra.mxu0 0.0
        %816 = vmatprep.subr.mxu0 0.0
        %817 = vmatpush1.msra.mxu0 0.0
        %818 = vmatprep.subr.mxu0 0.0
        %819 = vmatpush1.msra.mxu0 0.0
        %820 = vmatprep.subr.mxu0 0.0
        %821 = vmatpush1.msra.mxu0 0.0
        %822 = vmatprep.subr.mxu0 0.0
        %823 = vmatpush1.msra.mxu0 0.0
        %824 = vmatprep.subr.mxu0 0.0
        %825 = vmatpush1.msra.mxu0 0.0
        %826 = vmatprep.subr.mxu0 0.0
        %827 = vmatpush1.msra.mxu0 0.0
        %828 = vmatprep.subr.mxu0 %v397
        %829 = vmatpush1.msra.mxu0 %v396
        %830 = vmatprep.subr.mxu0 %v393
        %831 = vmatpush1.msra.mxu0 %v392
        %832 = vmatprep.subr.mxu0 0.0
        %833 = vmatpush2.msra.mxu0 0.0
        %834 = vmatprep.subr.mxu0 0.0
        %835 = vmatpush2.msra.mxu0 0.0
        %836 = vmatprep.subr.mxu0 0.0
        %837 = vmatpush2.msra.mxu0 0.0
        %838 = vmatprep.subr.mxu0 0.0
        %839 = vmatpush2.msra.mxu0 0.0
        %840 = vmatprep.subr.mxu0 0.0
        %841 = vmatpush2.msra.mxu0 0.0
        %842 = vmatprep.subr.mxu0 0.0
        %843 = vmatpush2.msra.mxu0 0.0
        %844 = vmatprep.subr.mxu0 0.0
        %845 = vmatpush2.msra.mxu0 0.0
        %846 = vmatprep.subr.mxu0 0.0
        %847 = vmatpush2.msra.mxu0 0.0
        %848 = vmatprep.subr.mxu0 0.0
        %849 = vmatpush2.msra.mxu0 0.0
        %850 = vmatprep.subr.mxu0 0.0
        %851 = vmatpush2.msra.mxu0 0.0
        %852 = vmatprep.subr.mxu0 0.0
        %853 = vmatpush2.msra.mxu0 0.0
        %854 = vmatprep.subr.mxu0 0.0
        %855 = vmatpush2.msra.mxu0 0.0
        %856 = vmatprep.subr.mxu0 0.0
        %857 = vmatpush2.msra.mxu0 0.0
        %858 = vmatprep.subr.mxu0 0.0
        %859 = vmatpush2.msra.mxu0 0.0
        %860 = vmatprep.subr.mxu0 0.0
        %861 = vmatpush2.msra.mxu0 0.0
        %862 = vmatprep.subr.mxu0 0.0
        %863 = vmatpush2.msra.mxu0 0.0
        %864 = vmatprep.mubr.f32.mxu0 0.0
        %865 = vmatmul.mubr.f32.gmra.mxu0 %v718
        %v866 = vpop.f32.mrf.mxu0
        %v867 = vadd.f32 %v710, %v866
        %v868 = vpop.f32.mrf.mxu0
        %v869 = vadd.f32 %v710, %v868
        %870 = vmatprep.mubr.f32.mxu0 0.0
        %871 = vmatmul.mubr.f32.gmra.mxu0 %v721
        %v872 = vpop.f32.mrf.mxu0
        %v873 = vadd.f32 %v715, %v872
        %v874 = vpop.f32.mrf.mxu0
        %v875 = vadd.f32 %v715, %v874
        %876 = vdwg.mxu0
        %v881 = vcombine.low %v476, %v478
        %v882 = vcombine.low %v547, %v549
        %v884 = vunpack.c.l.s4 1983009808
        %v885 = vunpack.c.0.s8 %v884
        %v886 = vlaneseq
        %v887 = vshrl.u32 %v886, 7
        %v888 = vsub.s32 %v885, %v887
        %v889 = vrot.slane %v881, %v888
        %v891 = vunpack.c.l.s4 1983009808
        %v892 = vunpack.c.0.s8 %v891
        %v893 = vlaneseq
        %v894 = vshrl.u32 %v893, 7
        %v895 = vsub.s32 %v892, %v894
        %v896 = vrot.slane %v882, %v895
        %v897 = vcombine.low %v889, %v896
        %899 = vst [vmem:[%s381] sm:$0xff] %v897
        %v904 = vcombine.low %v628, %v630
        %v905 = vcombine.low %v699, %v701
        %v907 = vunpack.c.l.s4 1983009808
        %v908 = vunpack.c.0.s8 %v907
        %v909 = vlaneseq
        %v910 = vshrl.u32 %v909, 7
        %v911 = vsub.s32 %v908, %v910
        %v912 = vrot.slane %v904, %v911
        %v914 = vunpack.c.l.s4 1983009808
        %v915 = vunpack.c.0.s8 %v914
        %v916 = vlaneseq
        %v917 = vshrl.u32 %v916, 7
        %v918 = vsub.s32 %v915, %v917
        %v919 = vrot.slane %v905, %v918
        %v920 = vcombine.low %v912, %v919
        %922 = vst [vmem:[%s387] sm:$0xff] %v920
        %923 = vst [vmem:[%s375] sm:$0xff] %v790
        %924 = vst [vmem:[%s375 + $0x8] sm:$0xff] %v792
        %925 = vst [vmem:[%s375 + $0x10] sm:$0xff] %v867
        %926 = vst [vmem:[%s375 + $0x18] sm:$0xff] %v869
        %927 = vst [vmem:[%s375 + $0x20] sm:$0xff] %v796
        %928 = vst [vmem:[%s375 + $0x28] sm:$0xff] %v798
        %929 = vst [vmem:[%s375 + $0x30] sm:$0xff] %v873
        %930 = vst [vmem:[%s375 + $0x38] sm:$0xff] %v875
        %s931 = smul.u32 4, %s21
        %p932 = scmp.lt.s32.totalorder %s931, 7
        %s933 = scalar_select %p932, %s931, 7
        %s934 = smul.addr %s933, 2
        %s935 = scalar_lea.vmem %s7, %s934
        %s936 = smul.u32 4, %s21
        %p937 = scmp.lt.s32.totalorder %s936, 7
        %s938 = scalar_select %p937, %s936, 7
        %s939 = smul.addr %s938, 2
        %s940 = scalar_lea.vmem %s8, %s939
        %s941 = sand.u32 %s233, 1
        %s942 = sand.u32 %s233, 1
        %s943 = smul.addr %s942, 64
        %s944 = scalar_lea.vmem [#allocation3], %s943
        // Predicated region
        $region72: #{issa_forward.2} parent=66 // pred_check
          %p945 = pneg %p191
        $region73: #{issa_forward.2} parent=66 // pred_check_branch
          %947 = sbr.rel (%p945) target = $region75
        $region74: #{issa_forward.2} parent=66 // pred_region
          %s948 = smul.u32 4, %s21
        $region75: #{issa_forward.2} parent=66 // pred_fallthru
          _
        // Predicated region
        $region76: #{issa_forward.2} parent=66 // pred_check
          %p949 = pneg %p217
        $region77: #{issa_forward.2} parent=66 // pred_check_branch
          %951 = sbr.rel (%p949) target = $region79
        $region78: #{issa_forward.2} parent=66 // pred_region
          %s952 = smul.u32 4, %s21
        $region79: #{issa_forward.2} parent=66 // pred_fallthru
          _
        // Predicated region
        $region80: #{issa_forward.2} parent=66 // pred_check
          %p953 = pneg %p243
        $region81: #{issa_forward.2} parent=66 // pred_check_branch
          %955 = sbr.rel (%p953) target = $region83
        $region82: #{issa_forward.2} parent=66 // pred_region
          %s956 = smul.u32 4, %s21
          %s957 = smul.addr %s956, 8
          %s958 = scalar_lea.vmem %s9, %s957
          // Predicated region
          $region84: #{issa_forward.2} parent=82 // pred_check
            _
          $region85: #{issa_forward.2} parent=82 // pred_check_branch
            %960 = sbr.rel (0) target = $region87
          $region86: #{issa_forward.2} parent=82 // pred_region
            // Predicated region
            $region88: #{issa_forward.2} parent=86 // pred_check
              _
            $region89: #{issa_forward.2} parent=86 // pred_check_branch
              %962 = sbr.rel (0) target = $region91
            $region90: #{issa_forward.2} parent=86 // pred_region
              loop: start=0, step=1, limit=1
              $region92: #{issa_forward.2} parent=90 // loop_pre_header
                _
              $region93: #{issa_forward.2} parent=90 // loop_header
                %s964 = sphi 0, %s968
                %p965 = scmp.ge.s32.totalorder %s964, 1
                %s969 = sphi %s944, %s944
                %s970 = sphi %s958, %s958
              $region94: #{issa_forward.2} parent=90 // loop_header_branch
                %967 = sbr.rel (%p965) target = $region98
              $region95: #{issa_forward.2} parent=90 // loop_body
                %v971 = vld [vmem:[%s969] sm:$0xff]
                %972 = vst [vmem:[%s970] sm:$0xff] %v971
                %v973 = vld [vmem:[%s969 + $0x8] sm:$0xff]
                %974 = vst [vmem:[%s970 + $0x8] sm:$0xff] %v973
                %v975 = vld [vmem:[%s969 + $0x10] sm:$0xff]
                %976 = vst [vmem:[%s970 + $0x10] sm:$0xff] %v975
                %v977 = vld [vmem:[%s969 + $0x18] sm:$0xff]
                %978 = vst [vmem:[%s970 + $0x18] sm:$0xff] %v977
                %v979 = vld [vmem:[%s969 + $0x20] sm:$0xff]
                %980 = vst [vmem:[%s970 + $0x40] sm:$0xff] %v979
                %v981 = vld [vmem:[%s969 + $0x28] sm:$0xff]
                %982 = vst [vmem:[%s970 + $0x48] sm:$0xff] %v981
                %v983 = vld [vmem:[%s969 + $0x30] sm:$0xff]
                %984 = vst [vmem:[%s970 + $0x50] sm:$0xff] %v983
                %v985 = vld [vmem:[%s969 + $0x38] sm:$0xff]
                %986 = vst [vmem:[%s970 + $0x58] sm:$0xff] %v985
              $region96: #{issa_forward.2} parent=90 // loop_footer
                %s968 = sadd.s32 1, %s964
              $region97: #{issa_forward.2} parent=90 // loop_footer_branch
                %963 = sbr.rel target = $region93
              $region98: #{issa_forward.2} parent=90 // loop_exit
                _
            $region91: #{issa_forward.2} parent=86 // pred_fallthru
              _
            // Predicated region
            $region99: #{issa_forward.2} parent=86 // pred_check
              _
            $region100: #{issa_forward.2} parent=86 // pred_check_branch
              %988 = sbr.rel target = $region102
            $region101: #{issa_forward.2} parent=86 // pred_region
              _
            $region102: #{issa_forward.2} parent=86 // pred_fallthru
              _
          $region87: #{issa_forward.2} parent=82 // pred_fallthru
            _
          %989 = vnop
        $region83: #{issa_forward.2} parent=66 // pred_fallthru
          _
      $region67: #{issa_forward.2} parent=5 // pred_fallthru
        _
      %p990 = scmp.le.s32.totalorder 2, %s16
      // Predicated region
      $region103: #{issa_forward.2} parent=5 // pred_check
        %p991 = pneg %p990
      $region104: #{issa_forward.2} parent=5 // pred_check_branch
        %993 = sbr.rel (%p991) target = $region106
      $region105: #{issa_forward.2} parent=5 // pred_region
        %s994 = ssub.s32 %s16, 2
        // Predicated region
        $region107: #{issa_forward.2} parent=105 // pred_check
          %p995 = pneg %p197
        $region108: #{issa_forward.2} parent=105 // pred_check_branch
          %997 = sbr.rel (%p995) target = $region110
        $region109: #{issa_forward.2} parent=105 // pred_region
          %s998 = smul.u32 4, %s22
          %p999 = scmp.lt.s32.totalorder %s998, 7
          %s1000 = scalar_select %p999, %s998, 7
          %s1001 = smul.addr %s1000, 2
          %s1002 = scalar_lea.vmem %s7, %s1001
        $region110: #{issa_forward.2} parent=105 // pred_fallthru
          _
        // Predicated region
        $region111: #{issa_forward.2} parent=105 // pred_check
          %p1003 = pneg %p223
        $region112: #{issa_forward.2} parent=105 // pred_check_branch
          %1005 = sbr.rel (%p1003) target = $region114
        $region113: #{issa_forward.2} parent=105 // pred_region
          %s1006 = smul.u32 4, %s22
          %p1007 = scmp.lt.s32.totalorder %s1006, 7
          %s1008 = scalar_select %p1007, %s1006, 7
          %s1009 = smul.addr %s1008, 2
          %s1010 = scalar_lea.vmem %s8, %s1009
        $region114: #{issa_forward.2} parent=105 // pred_fallthru
          _
        // Predicated region
        $region115: #{issa_forward.2} parent=105 // pred_check
          %p1011 = pneg %p249
        $region116: #{issa_forward.2} parent=105 // pred_check_branch
          %1013 = sbr.rel (%p1011) target = $region118
        $region117: #{issa_forward.2} parent=105 // pred_region
          %s1014 = sand.u32 %s234, 1
          %s1015 = sand.u32 %s234, 1
          %s1016 = smul.addr %s1015, 64
          %s1017 = scalar_lea.vmem [#allocation3], %s1016
        $region118: #{issa_forward.2} parent=105 // pred_fallthru
          _
      $region106: #{issa_forward.2} parent=5 // pred_fallthru
        _
    $region6: #{issa_forward.2} parent=1 // loop_footer
      %s20 = sadd.s32 1, %s16
    $region7: #{issa_forward.2} parent=1 // loop_footer_branch
      %15 = sbr.rel target = $region3
    $region8: #{issa_forward.2} parent=1 // loop_exit
      _

</llo_original>
